<compile_context>
chip_gen: v5e
topology: v5e:2x2
jax: 0.10.0
libtpu: 0.0.40
codegen_flags: <defaults>
</compile_context>

<pallas_src>
import functools

import jax
import jax.numpy as jnp
from jax.experimental import pallas as pl
from jax.experimental.pallas import tpu as pltpu

LANE = 128  # lane width; weight feature dims are zero-padded to this


def _mlp_kernel(x_ref, w_ref, b_ref, o_ref):
    """Fused 4-layer MLP on one (batch_tile, F) raw-input slab.

    x_ref: (tile, F)     float32 raw input (F = in_features, multiple of 8)
    w_ref: (4, 128, 128) compute dtype (f32 or bf16), zero-padded (in, out)
    b_ref: (4, 1, 128)   float32 zero-padded biases
    o_ref: (tile, out)   float32 logits (out == real output width, e.g. 2)
    """
    compute_dtype = w_ref.dtype
    f = x_ref.shape[1]            # static
    out_dim = o_ref.shape[1]      # static

    # Layer 1: raw f32 tile cast in VMEM, matmul against the live rows of the
    # padded weight (K = f, MXU pads internally).
    h = x_ref[...].astype(compute_dtype)
    z = jnp.dot(h, w_ref[0, :f, :], preferred_element_type=jnp.float32)
    z = z + b_ref[0]                                    # f32 bias add
    h = jnp.maximum(z, 0.0).astype(compute_dtype)       # f32 ReLU, cast for MXU

    # Layers 2-3 (statically unrolled): full 128x128 padded matmuls; padded
    # lanes stay exactly zero (zero weight rows/cols, zero bias lanes).
    for layer in (1, 2):
        z = jnp.dot(h, w_ref[layer], preferred_element_type=jnp.float32)
        z = z + b_ref[layer]
        h = jnp.maximum(z, 0.0).astype(compute_dtype)

    # Layer 4 (no activation): keep only the real output columns.
    z = jnp.dot(h, w_ref[3], preferred_element_type=jnp.float32) + b_ref[3]
    o_ref[...] = z[:, :out_dim].astype(o_ref.dtype)


def pack_params(params, *, compute_dtype=jnp.bfloat16):
    """One-time packing: pad every (in,out) W to (128,128) and (1,out) b to
    (1,128), stack into (4,128,128) / (4,1,128) slabs. Do this once, outside
    the per-call path."""
    ws, bs = [], []
    for (w, b) in params:
        fi, fo = w.shape
        assert fi <= LANE and fo <= LANE, "feature dims must be <= 128"
        ws.append(jnp.pad(w, ((0, LANE - fi), (0, LANE - fo))))
        b2 = b.reshape(1, -1)
        bs.append(jnp.pad(b2, ((0, 0), (0, LANE - b2.shape[1]))))
    w_stack = jnp.stack(ws).astype(compute_dtype)
    b_stack = jnp.stack(bs).astype(jnp.float32)
    return w_stack, b_stack


def _choose_batch_tile(B, *, max_tile=2048):
    """Multiple-of-8 tile giving an even number (>=2) of grid steps when B is
    large enough: amortizes per-step overhead and balances v7x's two TCs."""
    if B <= 16:
        return 8
    n_pairs = max(1, pl.cdiv(B, 2 * max_tile))
    n_tiles = 2 * n_pairs
    return pl.cdiv(pl.cdiv(B, n_tiles), 8) * 8


def discriminator_forward(x, w_stack, b_stack, *, dims, batch_tile=None):
    """x: (B, F) float32.  w_stack/b_stack: from pack_params.
    dims: static tuple of layer widths, e.g. (40, 64, 128, 64, 2).
    Returns (B, dims[-1]) float32 logits."""
    B, F = x.shape
    assert F == dims[0], "input feature dim mismatch"
    assert F <= LANE, "in_features must be <= 128"
    out_dim = dims[-1]

    # Pad the feature dim up to a multiple of 8 only if needed (F=40: no-op).
    F8 = pl.cdiv(F, 8) * 8
    if F8 != F:
        x = jnp.pad(x, ((0, 0), (0, F8 - F)))

    if batch_tile is None:
        batch_tile = _choose_batch_tile(B)
    assert batch_tile % 8 == 0, "batch_tile must be a multiple of 8"
    n_tiles = pl.cdiv(B, batch_tile)
    b_pad = n_tiles * batch_tile
    if b_pad != B:
        x = jnp.pad(x, ((0, b_pad - B), (0, 0)))
    x = x.astype(jnp.float32)

    # Advisory cost: useful (un-padded) FLOPs and actual HBM bytes.
    useful_flops = 2 * b_pad * sum(a * b for a, b in zip(dims[:-1], dims[1:]))
    bytes_accessed = (b_pad * F8 * 4
                      + w_stack.size * jnp.dtype(w_stack.dtype).itemsize
                      + b_stack.size * 4
                      + b_pad * out_dim * 4)
    cost = pl.CostEstimate(flops=int(useful_flops), transcendentals=0,
                           bytes_accessed=int(bytes_accessed))

    out = pl.pallas_call(
        _mlp_kernel,
        out_shape=jax.ShapeDtypeStruct((b_pad, out_dim), jnp.float32),
        grid_spec=pltpu.PrefetchScalarGridSpec(
            num_scalar_prefetch=0,
            grid=(n_tiles,),
            in_specs=[
                # Raw input tile: last block dim == full array dim (legal).
                pl.BlockSpec((batch_tile, F8), lambda i: (i, 0)),
                # Constant-index weight/bias slabs: DMA'd once, reused.
                pl.BlockSpec((4, LANE, LANE), lambda i: (0, 0, 0)),
                pl.BlockSpec((4, 1, LANE), lambda i: (0, 0, 0)),
            ],
            out_specs=pl.BlockSpec((batch_tile, out_dim), lambda i: (i, 0)),
        ),
        compiler_params=pltpu.CompilerParams(
            dimension_semantics=("parallel",)),
        cost_estimate=cost,
    )(x, w_stack, b_stack)

    return out[:B]


def init_params(key, dims):
    """Deterministic init mimicking PyTorch Linear default (uniform +/- 1/sqrt(fan_in)).
    Returns list of (W, b) with W stored as (in_features, out_features)."""
    params = []
    for (fan_in, fan_out) in zip(dims[:-1], dims[1:]):
        key, kw, kb = jax.random.split(key, 3)
        bound = 1.0 / jnp.sqrt(jnp.float32(fan_in))
        w = jax.random.uniform(kw, (fan_in, fan_out), jnp.float32, -bound, bound)
        b = jax.random.uniform(kb, (1, fan_out), jnp.float32, -bound, bound)
        params.append((w, b))
    return params


def reference_forward(x, params):
    h = x
    for i, (w, b) in enumerate(params):
        h = h @ w + b
        if i < len(params) - 1:
            h = jnp.maximum(h, 0.0)
    return h


if __name__ == "__main__":
    SOURCE_COLOR_NUM = 9                  # input features = SOURCE_COLOR_NUM + 31 = 40
    in_features = SOURCE_COLOR_NUM + 31
    dims = (in_features, 64, 128, 64, 2)
    batch = 1024                          # -> 2 grid steps of 512 rows each

    key = jax.random.PRNGKey(0)
    key, kx = jax.random.split(key)
    x = jax.random.normal(kx, (batch, in_features), dtype=jnp.float32)
    params = init_params(key, dims)
    ref = reference_forward(x, params)

    fwd = jax.jit(discriminator_forward, static_argnames=("dims", "batch_tile"))

    # f32 compute path: must match the pure-JAX reference tightly.
    w32, b32 = pack_params(params, compute_dtype=jnp.float32)
    out_f32 = jax.block_until_ready(fwd(x, w32, b32, dims=dims))
    assert out_f32.shape == (batch, 2)
    assert jnp.allclose(out_f32, ref, atol=1e-4, rtol=1e-4), \
        "f32 kernel mismatch vs pure-JAX reference"

    # bf16 MXU path (default fast path on v6e/v7x): loose tolerance.
    wbf, bbf = pack_params(params, compute_dtype=jnp.bfloat16)
    out_bf16 = jax.block_until_ready(fwd(x, wbf, bbf, dims=dims))
    assert out_bf16.shape == (batch, 2)
    assert jnp.allclose(out_bf16, ref, atol=5e-2, rtol=5e-2), \
        "bf16 kernel mismatch vs pure-JAX reference"

    print("KERNEL_OK")
</pallas_src>

<mosaic_0001>
module attributes {stable_mosaic.version = 11 : i64} {
  func.func @_mlp_kernel(%arg0: i32, %arg1: memref<512x40xf32, #tpu.memory_space<vmem>>, %arg2: memref<4x128x128xf32, #tpu.memory_space<vmem>>, %arg3: memref<4x1x128xf32, #tpu.memory_space<vmem>>, %arg4: memref<512x2xf32, #tpu.memory_space<vmem>>) attributes {dimension_semantics = [#tpu.dimension_semantics<parallel>], iteration_bounds = array<i64: 2>, scalar_prefetch = 0 : i64, scratch_operands = 0 : i64, tpu.core_type = #tpu.core_type<tc>, window_params = [{transform_indices = @transform_0, window_bounds = array<i64: 512, 40>}, {pipeline_mode = #tpu.pipeline_mode<synchronous>, transform_indices = @transform_1, window_bounds = array<i64: 4, 128, 128>}, {pipeline_mode = #tpu.pipeline_mode<synchronous>, transform_indices = @transform_2, window_bounds = array<i64: 4, 1, 128>}, {transform_indices = @transform_3, window_bounds = array<i64: 512, 2>}]} {
    %c0 = arith.constant 0 : index
    %c0_0 = arith.constant 0 : index
    %0 = vector.load %arg1[%c0, %c0_0] : memref<512x40xf32, #tpu.memory_space<vmem>>, vector<512x40xf32>
    %c0_1 = arith.constant 0 : index
    %c0_2 = arith.constant 0 : index
    %c0_3 = arith.constant 0 : index
    %1 = vector.load %arg2[%c0_1, %c0_2, %c0_3] : memref<4x128x128xf32, #tpu.memory_space<vmem>>, vector<1x40x128xf32>
    %2 = vector.shape_cast %1 : vector<1x40x128xf32> to vector<40x128xf32>
    %cst = arith.constant dense<0.000000e+00> : vector<512x128xf32>
    %3 = tpu.matmul %0, %2, %cst {dimension_numbers = #tpu.dot_dimension_numbers<[1], [0], [0], [1], [0, 0, 1, 1], [], []>} : vector<512x40xf32>, vector<40x128xf32>, vector<512x128xf32> -> vector<512x128xf32>
    %c0_4 = arith.constant 0 : index
    %c0_5 = arith.constant 0 : index
    %c0_6 = arith.constant 0 : index
    %4 = vector.load %arg3[%c0_4, %c0_5, %c0_6] : memref<4x1x128xf32, #tpu.memory_space<vmem>>, vector<1x1x128xf32>
    %5 = vector.shape_cast %4 : vector<1x1x128xf32> to vector<1x128xf32>
    %6 = vector.broadcast %5 : vector<1x128xf32> to vector<512x128xf32>
    %7 = arith.addf %3, %6 : vector<512x128xf32>
    %cst_7 = arith.constant 0.000000e+00 : f32
    %8 = vector.broadcast %cst_7 : f32 to vector<512x128xf32>
    %9 = arith.maximumf %7, %8 : vector<512x128xf32>
    %c1 = arith.constant 1 : index
    %c0_8 = arith.constant 0 : index
    %c0_9 = arith.constant 0 : index
    %10 = vector.load %arg2[%c1, %c0_8, %c0_9] : memref<4x128x128xf32, #tpu.memory_space<vmem>>, vector<1x128x128xf32>
    %11 = vector.shape_cast %10 : vector<1x128x128xf32> to vector<128x128xf32>
    %cst_10 = arith.constant dense<0.000000e+00> : vector<512x128xf32>
    %12 = tpu.matmul %9, %11, %cst_10 {dimension_numbers = #tpu.dot_dimension_numbers<[1], [0], [0], [1], [0, 0, 1, 1], [], []>} : vector<512x128xf32>, vector<128x128xf32>, vector<512x128xf32> -> vector<512x128xf32>
    %c1_11 = arith.constant 1 : index
    %c0_12 = arith.constant 0 : index
    %c0_13 = arith.constant 0 : index
    %13 = vector.load %arg3[%c1_11, %c0_12, %c0_13] : memref<4x1x128xf32, #tpu.memory_space<vmem>>, vector<1x1x128xf32>
    %14 = vector.shape_cast %13 : vector<1x1x128xf32> to vector<1x128xf32>
    %15 = vector.broadcast %14 : vector<1x128xf32> to vector<512x128xf32>
    %16 = arith.addf %12, %15 : vector<512x128xf32>
    %cst_14 = arith.constant 0.000000e+00 : f32
    %17 = vector.broadcast %cst_14 : f32 to vector<512x128xf32>
    %18 = arith.maximumf %16, %17 : vector<512x128xf32>
    %c2 = arith.constant 2 : index
    %c0_15 = arith.constant 0 : index
    %c0_16 = arith.constant 0 : index
    %19 = vector.load %arg2[%c2, %c0_15, %c0_16] : memref<4x128x128xf32, #tpu.memory_space<vmem>>, vector<1x128x128xf32>
    %20 = vector.shape_cast %19 : vector<1x128x128xf32> to vector<128x128xf32>
    %cst_17 = arith.constant dense<0.000000e+00> : vector<512x128xf32>
    %21 = tpu.matmul %18, %20, %cst_17 {dimension_numbers = #tpu.dot_dimension_numbers<[1], [0], [0], [1], [0, 0, 1, 1], [], []>} : vector<512x128xf32>, vector<128x128xf32>, vector<512x128xf32> -> vector<512x128xf32>
    %c2_18 = arith.constant 2 : index
    %c0_19 = arith.constant 0 : index
    %c0_20 = arith.constant 0 : index
    %22 = vector.load %arg3[%c2_18, %c0_19, %c0_20] : memref<4x1x128xf32, #tpu.memory_space<vmem>>, vector<1x1x128xf32>
    %23 = vector.shape_cast %22 : vector<1x1x128xf32> to vector<1x128xf32>
    %24 = vector.broadcast %23 : vector<1x128xf32> to vector<512x128xf32>
    %25 = arith.addf %21, %24 : vector<512x128xf32>
    %cst_21 = arith.constant 0.000000e+00 : f32
    %26 = vector.broadcast %cst_21 : f32 to vector<512x128xf32>
    %27 = arith.maximumf %25, %26 : vector<512x128xf32>
    %c3 = arith.constant 3 : index
    %c0_22 = arith.constant 0 : index
    %c0_23 = arith.constant 0 : index
    %28 = vector.load %arg2[%c3, %c0_22, %c0_23] : memref<4x128x128xf32, #tpu.memory_space<vmem>>, vector<1x128x128xf32>
    %29 = vector.shape_cast %28 : vector<1x128x128xf32> to vector<128x128xf32>
    %cst_24 = arith.constant dense<0.000000e+00> : vector<512x128xf32>
    %30 = tpu.matmul %27, %29, %cst_24 {dimension_numbers = #tpu.dot_dimension_numbers<[1], [0], [0], [1], [0, 0, 1, 1], [], []>} : vector<512x128xf32>, vector<128x128xf32>, vector<512x128xf32> -> vector<512x128xf32>
    %c3_25 = arith.constant 3 : index
    %c0_26 = arith.constant 0 : index
    %c0_27 = arith.constant 0 : index
    %31 = vector.load %arg3[%c3_25, %c0_26, %c0_27] : memref<4x1x128xf32, #tpu.memory_space<vmem>>, vector<1x1x128xf32>
    %32 = vector.shape_cast %31 : vector<1x1x128xf32> to vector<1x128xf32>
    %33 = vector.broadcast %32 : vector<1x128xf32> to vector<512x128xf32>
    %34 = arith.addf %30, %33 : vector<512x128xf32>
    %35 = vector.extract_strided_slice %34 {offsets = [0, 0], sizes = [512, 2], strides = [1, 1]} : vector<512x128xf32> to vector<512x2xf32>
    %c0_28 = arith.constant 0 : index
    %c0_29 = arith.constant 0 : index
    %36 = vector.load %arg4[%c0_28, %c0_29] : memref<512x2xf32, #tpu.memory_space<vmem>>, vector<512x2xf32>
    tpu.vector_store %arg4[%c0_28, %c0_29], %35 {strides = array<i32>} : memref<512x2xf32, #tpu.memory_space<vmem>>, vector<512x2xf32>,
    return
  }
  func.func @transform_0(%arg0: i32) -> (i32, i32) {
    %c0_i32 = arith.constant 0 : i32
    %c0_i32_0 = arith.constant 0 : i32
    return %arg0, %c0_i32 : i32, i32
  }
  func.func @transform_1(%arg0: i32) -> (i32, i32, i32) {
    %c0_i32 = arith.constant 0 : i32
    %c0_i32_0 = arith.constant 0 : i32
    %c0_i32_1 = arith.constant 0 : i32
    %c0_i32_2 = arith.constant 0 : i32
    return %c0_i32, %c0_i32_0, %c0_i32_1 : i32, i32, i32
  }
  func.func @transform_2(%arg0: i32) -> (i32, i32, i32) {
    %c0_i32 = arith.constant 0 : i32
    %c0_i32_0 = arith.constant 0 : i32
    %c0_i32_1 = arith.constant 0 : i32
    %c0_i32_2 = arith.constant 0 : i32
    return %c0_i32, %c0_i32_0, %c0_i32_1 : i32, i32, i32
  }
  func.func @transform_3(%arg0: i32) -> (i32, i32) {
    %c0_i32 = arith.constant 0 : i32
    %c0_i32_0 = arith.constant 0 : i32
    return %arg0, %c0_i32 : i32, i32
  }
}

</mosaic_0001>

<llo_original>
// kernel: discriminator_forward.1
$region0: #{discriminator_forward.1}
  #allocation0 [shape = 'u32[]', space=smem, size = 0x4, offset = 0x4, fixed_abs, tag = 'smem constant byte address 0x4 - core index']
  #allocation1 [shape = 'u32[72,128]{1,0:T(1,128)}', space=vmem, size = 0x9000, scoped, tag = 'internal scratch']
  %s0 = inlined_call_operand.vmem [shape: f32[1024,40], index: 0, kind: input, shape index: {}]
  %s1 = inlined_call_operand.vmem [shape: f32[4,128,128], index: 1, kind: input, shape index: {}]
  %s2 = inlined_call_operand.vmem [shape: f32[4,1,128], index: 2, kind: input, shape index: {}]
  %s3 = inlined_call_operand.vmem [shape: f32[1024,2], index: 3, kind: output, shape index: {}]
  %s4 = sld [smem:[#allocation0]]
  $region45: #{discriminator_forward.1} parent=0
    _
  %s6 = ssub.s32 1, %s4
  %s7 = scalar_select 0, %s6, %s4
  loop: start=0, step=1, limit=4
  $region2: #{discriminator_forward.1} parent=0 // loop_pre_header
    _
  $region3: #{discriminator_forward.1} parent=0 // loop_header
    %s9 = sphi 0, %s13
    %p10 = scmp.ge.s32.totalorder %s9, 4
    %s19 = sphi 0, %s21
    %s22 = sphi 0, %s19
    %s23 = sphi 0, %s22
    %s39 = sphi 0, %s23
    %s43 = sphi 0, %s43
    %s45 = sphi 0, %s43
    %s46 = sphi 0, %s45
    %s60 = sphi 0, %s46
    %s64 = sphi 0, %s64
    %s66 = sphi 0, %s64
    %s67 = sphi 0, %s66
    %s81 = sphi 0, %s67
    %s87 = sphi 0, %s89
    %s90 = sphi 0, %s87
    %s91 = sphi 0, %s90
    %s107 = sphi 0, %s91
  $region4: #{discriminator_forward.1} parent=0 // loop_header_branch
    %12 = sbr.rel (%p10) target = $region8
  $region5: #{discriminator_forward.1} parent=0 // loop_body
    %s14 = ssub.s32 %s9, 1
    %s15 = ssub.s32 %s9, 2
    %s16 = sadd.s32 %s9, 1
    %s17 = ssub.s32 %s9, %s16
    %p18 = scmp.eq.s32.totalorder %s17, 0
    %s20 = sadd.s32 %s19, 1
    %s21 = scalar_select %p18, %s19, %s20
    %p24 = pneg %p18
    %p25 = scmp.eq.s32.totalorder %s9, 1
    %p26 = por %p24, %p25
    %p27 = scmp.ne.s32.totalorder %s19, %s22
    %p28 = scmp.eq.s32.totalorder %s9, 0
    %p29 = por %p27, %p28
    %p30 = scmp.ne.s32.totalorder %s19, %s22
    %p31 = scmp.eq.s32.totalorder %s14, 1
    %p32 = por %p30, %p31
    %p33 = scmp.ne.s32.totalorder %s22, %s23
    %p34 = scmp.eq.s32.totalorder %s14, 0
    %p35 = por %p33, %p34
    %p36 = scmp.ne.s32.totalorder %s22, %s23
    %p37 = scmp.eq.s32.totalorder %s15, 1
    %p38 = por %p36, %p37
    %p40 = scmp.ne.s32.totalorder %s23, %s39
    %p41 = scmp.eq.s32.totalorder %s15, 0
    %p42 = por %p40, %p41
    %s44 = sadd.s32 %s43, 1
    %p47 = scmp.eq.s32.totalorder %s9, 1
    %p48 = scmp.ne.s32.totalorder %s43, %s45
    %p49 = scmp.eq.s32.totalorder %s9, 0
    %p50 = por %p48, %p49
    %p51 = scmp.ne.s32.totalorder %s43, %s45
    %p52 = scmp.eq.s32.totalorder %s14, 1
    %p53 = por %p51, %p52
    %p54 = scmp.ne.s32.totalorder %s45, %s46
    %p55 = scmp.eq.s32.totalorder %s14, 0
    %p56 = por %p54, %p55
    %p57 = scmp.ne.s32.totalorder %s45, %s46
    %p58 = scmp.eq.s32.totalorder %s15, 1
    %p59 = por %p57, %p58
    %p61 = scmp.ne.s32.totalorder %s46, %s60
    %p62 = scmp.eq.s32.totalorder %s15, 0
    %p63 = por %p61, %p62
    %s65 = sadd.s32 %s64, 1
    %p68 = scmp.eq.s32.totalorder %s9, 1
    %p69 = scmp.ne.s32.totalorder %s64, %s66
    %p70 = scmp.eq.s32.totalorder %s9, 0
    %p71 = por %p69, %p70
    %p72 = scmp.ne.s32.totalorder %s64, %s66
    %p73 = scmp.eq.s32.totalorder %s14, 1
    %p74 = por %p72, %p73
    %p75 = scmp.ne.s32.totalorder %s66, %s67
    %p76 = scmp.eq.s32.totalorder %s14, 0
    %p77 = por %p75, %p76
    %p78 = scmp.ne.s32.totalorder %s66, %s67
    %p79 = scmp.eq.s32.totalorder %s15, 1
    %p80 = por %p78, %p79
    %p82 = scmp.ne.s32.totalorder %s67, %s81
    %p83 = scmp.eq.s32.totalorder %s15, 0
    %p84 = por %p82, %p83
    %s85 = ssub.s32 %s9, %s16
    %p86 = scmp.eq.s32.totalorder %s85, 0
    %s88 = sadd.s32 %s87, 1
    %s89 = scalar_select %p86, %s87, %s88
    %p92 = pneg %p86
    %p93 = scmp.eq.s32.totalorder %s9, 1
    %p94 = por %p92, %p93
    %p95 = scmp.ne.s32.totalorder %s87, %s90
    %p96 = scmp.eq.s32.totalorder %s9, 0
    %p97 = por %p95, %p96
    %p98 = scmp.ne.s32.totalorder %s87, %s90
    %p99 = scmp.eq.s32.totalorder %s14, 1
    %p100 = por %p98, %p99
    %p101 = scmp.ne.s32.totalorder %s90, %s91
    %p102 = scmp.eq.s32.totalorder %s14, 0
    %p103 = por %p101, %p102
    %p104 = scmp.ne.s32.totalorder %s90, %s91
    %p105 = scmp.eq.s32.totalorder %s15, 1
    %p106 = por %p104, %p105
    %p108 = scmp.ne.s32.totalorder %s91, %s107
    %p109 = scmp.eq.s32.totalorder %s15, 0
    %p110 = por %p108, %p109
    %p111 = scmp.le.s32.totalorder 1, %s9
    %p112 = scmp.lt.s32.totalorder %s9, 3
    %p113 = pnand %p111, %p112
    %p114 = pneg %p113
    // Predicated region
    $region9: #{discriminator_forward.1} parent=5 // pred_check
      _
    $region10: #{discriminator_forward.1} parent=5 // pred_check_branch
      %116 = sbr.rel (%p113) target = $region12
    $region11: #{discriminator_forward.1} parent=5 // pred_region
      %s117 = ssub.s32 %s9, 1
      // Predicated region
      $region13: #{discriminator_forward.1} parent=11 // pred_check
        %p118 = pneg %p56
      $region14: #{discriminator_forward.1} parent=11 // pred_check_branch
        %120 = sbr.rel (%p118) target = $region16
      $region15: #{discriminator_forward.1} parent=11 // pred_region
        _
      $region16: #{discriminator_forward.1} parent=11 // pred_fallthru
        _
      // Predicated region
      $region17: #{discriminator_forward.1} parent=11 // pred_check
        %p121 = pneg %p77
      $region18: #{discriminator_forward.1} parent=11 // pred_check_branch
        %123 = sbr.rel (%p121) target = $region20
      $region19: #{discriminator_forward.1} parent=11 // pred_region
        _
      $region20: #{discriminator_forward.1} parent=11 // pred_fallthru
        _
    $region12: #{discriminator_forward.1} parent=5 // pred_fallthru
      _
    %p124 = scmp.lt.s32.totalorder %s9, 2
    // Predicated region
    $region21: #{discriminator_forward.1} parent=5 // pred_check
      %p125 = pneg %p124
    $region22: #{discriminator_forward.1} parent=5 // pred_check_branch
      %127 = sbr.rel (%p125) target = $region24
    $region23: #{discriminator_forward.1} parent=5 // pred_region
      // Predicated region
      $region25: #{discriminator_forward.1} parent=23 // pred_check
        %p128 = pneg %p29
      $region26: #{discriminator_forward.1} parent=23 // pred_check_branch
        %130 = sbr.rel (%p128) target = $region28
      $region27: #{discriminator_forward.1} parent=23 // pred_region
        %s131 = smul.u32 64, %s9
        %p132 = scmp.lt.s32.totalorder %s131, 127
        %s133 = scalar_select %p132, %s131, 127
        %s134 = smul.addr %s133, 8
        %s135 = scalar_lea.vmem %s0, %s134
        %s136 = smul.u32 64, %s9
      $region28: #{discriminator_forward.1} parent=23 // pred_fallthru
        _
    $region24: #{discriminator_forward.1} parent=5 // pred_fallthru
      _
    %p137 = scmp.le.s32.totalorder 1, %s9
    %p138 = scmp.lt.s32.totalorder %s9, 3
    %p139 = pnand %p137, %p138
    %p140 = pneg %p139
    // Predicated region
    $region29: #{discriminator_forward.1} parent=5 // pred_check
      _
    $region30: #{discriminator_forward.1} parent=5 // pred_check_branch
      %142 = sbr.rel (%p139) target = $region32
    $region31: #{discriminator_forward.1} parent=5 // pred_region
      %s143 = ssub.s32 %s9, 1
      %s144 = smul.u32 64, %s14
      %p145 = scmp.lt.s32.totalorder %s144, 127
      %s146 = scalar_select %p145, %s144, 127
      %s147 = smul.addr %s146, 8
      %s148 = scalar_lea.vmem %s0, %s147
      %p149 = pneg %p35
      %p150 = pneg %p32
      %p151 = pneg %p56
      %p152 = pneg %p53
      %p153 = pneg %p77
      %p154 = pneg %p74
      %p155 = pneg %p103
      %p156 = pneg %p100
      %s157 = smul.u32 64, %s14
      %p158 = scmp.lt.s32.totalorder %s157, 127
      %s159 = scalar_select %p158, %s157, 127
      %s160 = smul.addr %s159, 8
      %s161 = scalar_lea.vmem %s3, %s160
      %s162 = smul.u32 64, %s14
      %p163 = scmp.lt.s32.totalorder %s162, 127
      %s164 = scalar_select %p163, %s162, 127
      %s165 = smul.addr %s164, 8
      %s166 = scalar_lea.vmem %s0, %s165
      %s167 = smul.u32 64, %s14
      %s168 = smul.u32 64, %s14
      %p169 = scmp.lt.s32.totalorder %s168, 127
      %s170 = scalar_select %p169, %s168, 127
      %s171 = smul.addr %s170, 8
      %s172 = scalar_lea.vmem %s3, %s171
      %s173 = smul.u32 64, %s14
      %v174 = vld [vmem:[%s166] sm:$0xff]
      %v175 = vld [vmem:[%s166 + $0x8] sm:$0xff]
      %v176 = vld [vmem:[%s166 + $0x10] sm:$0xff]
      %v177 = vld [vmem:[%s166 + $0x18] sm:$0xff]
      %v178 = vld [vmem:[%s166 + $0x20] sm:$0xff]
      %v179 = vld [vmem:[%s166 + $0x28] sm:$0xff]
      %v180 = vld [vmem:[%s166 + $0x30] sm:$0xff]
      %v181 = vld [vmem:[%s166 + $0x38] sm:$0xff]
      %v182 = vld [vmem:[%s166 + $0x40] sm:$0xff]
      %v183 = vld [vmem:[%s166 + $0x48] sm:$0xff]
      %v184 = vld [vmem:[%s166 + $0x50] sm:$0xff]
      %v185 = vld [vmem:[%s166 + $0x58] sm:$0xff]
      %v186 = vld [vmem:[%s166 + $0x60] sm:$0xff]
      %v187 = vld [vmem:[%s166 + $0x68] sm:$0xff]
      %v188 = vld [vmem:[%s166 + $0x70] sm:$0xff]
      %v189 = vld [vmem:[%s166 + $0x78] sm:$0xff]
      %v190 = vld [vmem:[%s166 + $0x80] sm:$0xff]
      %v191 = vld [vmem:[%s166 + $0x88] sm:$0xff]
      %v192 = vld [vmem:[%s166 + $0x90] sm:$0xff]
      %v193 = vld [vmem:[%s166 + $0x98] sm:$0xff]
      %v194 = vld [vmem:[%s166 + $0xa0] sm:$0xff]
      %v195 = vld [vmem:[%s166 + $0xa8] sm:$0xff]
      %v196 = vld [vmem:[%s166 + $0xb0] sm:$0xff]
      %v197 = vld [vmem:[%s166 + $0xb8] sm:$0xff]
      %v198 = vld [vmem:[%s166 + $0xc0] sm:$0xff]
      %v199 = vld [vmem:[%s166 + $0xc8] sm:$0xff]
      %v200 = vld [vmem:[%s166 + $0xd0] sm:$0xff]
      %v201 = vld [vmem:[%s166 + $0xd8] sm:$0xff]
      %v202 = vld [vmem:[%s166 + $0xe0] sm:$0xff]
      %v203 = vld [vmem:[%s166 + $0xe8] sm:$0xff]
      %v204 = vld [vmem:[%s166 + $0xf0] sm:$0xff]
      %v205 = vld [vmem:[%s166 + $0xf8] sm:$0xff]
      %v206 = vld [vmem:[%s166 + $0x100] sm:$0xff]
      %v207 = vld [vmem:[%s166 + $0x108] sm:$0xff]
      %v208 = vld [vmem:[%s166 + $0x110] sm:$0xff]
      %v209 = vld [vmem:[%s166 + $0x118] sm:$0xff]
      %v210 = vld [vmem:[%s166 + $0x120] sm:$0xff]
      %v211 = vld [vmem:[%s166 + $0x128] sm:$0xff]
      %v212 = vld [vmem:[%s166 + $0x130] sm:$0xff]
      %v213 = vld [vmem:[%s166 + $0x138] sm:$0xff]
      %v214 = vld [vmem:[%s166 + $0x140] sm:$0xff]
      %v215 = vld [vmem:[%s166 + $0x148] sm:$0xff]
      %v216 = vld [vmem:[%s166 + $0x150] sm:$0xff]
      %v217 = vld [vmem:[%s166 + $0x158] sm:$0xff]
      %v218 = vld [vmem:[%s166 + $0x160] sm:$0xff]
      %v219 = vld [vmem:[%s166 + $0x168] sm:$0xff]
      %v220 = vld [vmem:[%s166 + $0x170] sm:$0xff]
      %v221 = vld [vmem:[%s166 + $0x178] sm:$0xff]
      %v222 = vld [vmem:[%s166 + $0x180] sm:$0xff]
      %v223 = vld [vmem:[%s166 + $0x188] sm:$0xff]
      %v224 = vld [vmem:[%s166 + $0x190] sm:$0xff]
      %v225 = vld [vmem:[%s166 + $0x198] sm:$0xff]
      %v226 = vld [vmem:[%s166 + $0x1a0] sm:$0xff]
      %v227 = vld [vmem:[%s166 + $0x1a8] sm:$0xff]
      %v228 = vld [vmem:[%s166 + $0x1b0] sm:$0xff]
      %v229 = vld [vmem:[%s166 + $0x1b8] sm:$0xff]
      %v230 = vld [vmem:[%s166 + $0x1c0] sm:$0xff]
      %v231 = vld [vmem:[%s166 + $0x1c8] sm:$0xff]
      %v232 = vld [vmem:[%s166 + $0x1d0] sm:$0xff]
      %v233 = vld [vmem:[%s166 + $0x1d8] sm:$0xff]
      %v234 = vld [vmem:[%s166 + $0x1e0] sm:$0xff]
      %v235 = vld [vmem:[%s166 + $0x1e8] sm:$0xff]
      %v236 = vld [vmem:[%s166 + $0x1f0] sm:$0xff]
      %v237 = vld [vmem:[%s166 + $0x1f8] sm:$0xff]
      %v238 = vld [vmem:[%s1] sm:$0xff]
      %v239 = vld [vmem:[%s1 + $0x8] sm:$0xff]
      %v240 = vld [vmem:[%s1 + $0x10] sm:$0xff]
      %v241 = vld [vmem:[%s1 + $0x18] sm:$0xff]
      %v242 = vld [vmem:[%s1 + $0x20] sm:$0xff]
      %v243 = vld [vmem:[%s2] sm:$0x1]
      %v245 = vperm.slane %v243, 0
      %vm247 = vcmask 326656
      %v249 = vsel %vm247, %v174, 0
      %v252 = vsel %vm247, %v175, 0
      %v255 = vsel %vm247, %v176, 0
      %v258 = vsel %vm247, %v177, 0
      %v261 = vsel %vm247, %v178, 0
      %v264 = vsel %vm247, %v179, 0
      %v267 = vsel %vm247, %v180, 0
      %v270 = vsel %vm247, %v181, 0
      %v273 = vsel %vm247, %v182, 0
      %v276 = vsel %vm247, %v183, 0
      %v279 = vsel %vm247, %v184, 0
      %v282 = vsel %vm247, %v185, 0
      %v285 = vsel %vm247, %v186, 0
      %v288 = vsel %vm247, %v187, 0
      %v291 = vsel %vm247, %v188, 0
      %v294 = vsel %vm247, %v189, 0
      %v297 = vsel %vm247, %v190, 0
      %v300 = vsel %vm247, %v191, 0
      %v303 = vsel %vm247, %v192, 0
      %v306 = vsel %vm247, %v193, 0
      %v309 = vsel %vm247, %v194, 0
      %v312 = vsel %vm247, %v195, 0
      %v315 = vsel %vm247, %v196, 0
      %v318 = vsel %vm247, %v197, 0
      %v321 = vsel %vm247, %v198, 0
      %v324 = vsel %vm247, %v199, 0
      %v327 = vsel %vm247, %v200, 0
      %v330 = vsel %vm247, %v201, 0
      %v333 = vsel %vm247, %v202, 0
      %v336 = vsel %vm247, %v203, 0
      %v339 = vsel %vm247, %v204, 0
      %v342 = vsel %vm247, %v205, 0
      %v345 = vsel %vm247, %v206, 0
      %v348 = vsel %vm247, %v207, 0
      %v351 = vsel %vm247, %v208, 0
      %v354 = vsel %vm247, %v209, 0
      %v357 = vsel %vm247, %v210, 0
      %v360 = vsel %vm247, %v211, 0
      %v363 = vsel %vm247, %v212, 0
      %v366 = vsel %vm247, %v213, 0
      %v369 = vsel %vm247, %v214, 0
      %v372 = vsel %vm247, %v215, 0
      %v375 = vsel %vm247, %v216, 0
      %v378 = vsel %vm247, %v217, 0
      %v381 = vsel %vm247, %v218, 0
      %v384 = vsel %vm247, %v219, 0
      %v387 = vsel %vm247, %v220, 0
      %v390 = vsel %vm247, %v221, 0
      %v393 = vsel %vm247, %v222, 0
      %v396 = vsel %vm247, %v223, 0
      %v399 = vsel %vm247, %v224, 0
      %v402 = vsel %vm247, %v225, 0
      %v405 = vsel %vm247, %v226, 0
      %v408 = vsel %vm247, %v227, 0
      %v411 = vsel %vm247, %v228, 0
      %v414 = vsel %vm247, %v229, 0
      %v417 = vsel %vm247, %v230, 0
      %v420 = vsel %vm247, %v231, 0
      %v423 = vsel %vm247, %v232, 0
      %v426 = vsel %vm247, %v233, 0
      %v429 = vsel %vm247, %v234, 0
      %v432 = vsel %vm247, %v235, 0
      %v435 = vsel %vm247, %v236, 0
      %v438 = vsel %vm247, %v237, 0
      %440 = vmatpush.msra.mxu0 0.0
      %441 = vmatpush.msra.mxu0 0.0
      %442 = vmatpush.msra.mxu0 0.0
      %443 = vmatpush.msra.mxu0 0.0
      %444 = vmatpush.msra.mxu0 0.0
      %445 = vmatpush.msra.mxu0 0.0
      %446 = vmatpush.msra.mxu0 0.0
      %447 = vmatpush.msra.mxu0 0.0
      %448 = vmatpush.msra.mxu0 0.0
      %449 = vmatpush.msra.mxu0 0.0
      %450 = vmatpush.msra.mxu0 0.0
      %451 = vmatpush.msra.mxu0 %v242
      %452 = vmatpush.msra.mxu0 %v241
      %453 = vmatpush.msra.mxu0 %v240
      %454 = vmatpush.msra.mxu0 %v239
      %455 = vmatpush.msra.mxu0 %v238
      %456 = vmatmul.f32.gmra.mxu0 %v249
      %v457 = vpop.f32.mrf.mxu0
      %v458 = vadd.f32 %v245, %v457
      %459 = vmatmul.f32.gmra.mxu0 %v252
      %v460 = vpop.f32.mrf.mxu0
      %v461 = vadd.f32 %v245, %v460
      %462 = vmatmul.f32.gmra.mxu0 %v255
      %v463 = vpop.f32.mrf.mxu0
      %v464 = vadd.f32 %v245, %v463
      %465 = vmatmul.f32.gmra.mxu0 %v258
      %v466 = vpop.f32.mrf.mxu0
      %v467 = vadd.f32 %v245, %v466
      %468 = vmatmul.f32.gmra.mxu0 %v261
      %v469 = vpop.f32.mrf.mxu0
      %v470 = vadd.f32 %v245, %v469
      %471 = vmatmul.f32.gmra.mxu0 %v264
      %v472 = vpop.f32.mrf.mxu0
      %v473 = vadd.f32 %v245, %v472
      %474 = vmatmul.f32.gmra.mxu0 %v267
      %v475 = vpop.f32.mrf.mxu0
      %v476 = vadd.f32 %v245, %v475
      %477 = vmatmul.f32.gmra.mxu0 %v270
      %v478 = vpop.f32.mrf.mxu0
      %v479 = vadd.f32 %v245, %v478
      %480 = vmatmul.f32.gmra.mxu0 %v273
      %v481 = vpop.f32.mrf.mxu0
      %v482 = vadd.f32 %v245, %v481
      %483 = vmatmul.f32.gmra.mxu0 %v276
      %v484 = vpop.f32.mrf.mxu0
      %v485 = vadd.f32 %v245, %v484
      %486 = vmatmul.f32.gmra.mxu0 %v279
      %v487 = vpop.f32.mrf.mxu0
      %v488 = vadd.f32 %v245, %v487
      %489 = vmatmul.f32.gmra.mxu0 %v282
      %v490 = vpop.f32.mrf.mxu0
      %v491 = vadd.f32 %v245, %v490
      %492 = vmatmul.f32.gmra.mxu0 %v285
      %v493 = vpop.f32.mrf.mxu0
      %v494 = vadd.f32 %v245, %v493
      %495 = vmatmul.f32.gmra.mxu0 %v288
      %v496 = vpop.f32.mrf.mxu0
      %v497 = vadd.f32 %v245, %v496
      %498 = vmatmul.f32.gmra.mxu0 %v291
      %v499 = vpop.f32.mrf.mxu0
      %v500 = vadd.f32 %v245, %v499
      %501 = vmatmul.f32.gmra.mxu0 %v294
      %v502 = vpop.f32.mrf.mxu0
      %v503 = vadd.f32 %v245, %v502
      %504 = vmatmul.f32.gmra.mxu0 %v297
      %v505 = vpop.f32.mrf.mxu0
      %v506 = vadd.f32 %v245, %v505
      %507 = vmatmul.f32.gmra.mxu0 %v300
      %v508 = vpop.f32.mrf.mxu0
      %v509 = vadd.f32 %v245, %v508
      %510 = vmatmul.f32.gmra.mxu0 %v303
      %v511 = vpop.f32.mrf.mxu0
      %v512 = vadd.f32 %v245, %v511
      %513 = vmatmul.f32.gmra.mxu0 %v306
      %v514 = vpop.f32.mrf.mxu0
      %v515 = vadd.f32 %v245, %v514
      %516 = vmatmul.f32.gmra.mxu0 %v309
      %v517 = vpop.f32.mrf.mxu0
      %v518 = vadd.f32 %v245, %v517
      %519 = vmatmul.f32.gmra.mxu0 %v312
      %v520 = vpop.f32.mrf.mxu0
      %v521 = vadd.f32 %v245, %v520
      %522 = vmatmul.f32.gmra.mxu0 %v315
      %v523 = vpop.f32.mrf.mxu0
      %v524 = vadd.f32 %v245, %v523
      %525 = vmatmul.f32.gmra.mxu0 %v318
      %v526 = vpop.f32.mrf.mxu0
      %v527 = vadd.f32 %v245, %v526
      %528 = vmatmul.f32.gmra.mxu0 %v321
      %v529 = vpop.f32.mrf.mxu0
      %v530 = vadd.f32 %v245, %v529
      %531 = vmatmul.f32.gmra.mxu0 %v324
      %v532 = vpop.f32.mrf.mxu0
      %v533 = vadd.f32 %v245, %v532
      %534 = vmatmul.f32.gmra.mxu0 %v327
      %v535 = vpop.f32.mrf.mxu0
      %v536 = vadd.f32 %v245, %v535
      %537 = vmatmul.f32.gmra.mxu0 %v330
      %v538 = vpop.f32.mrf.mxu0
      %v539 = vadd.f32 %v245, %v538
      %540 = vmatmul.f32.gmra.mxu0 %v333
      %v541 = vpop.f32.mrf.mxu0
      %v542 = vadd.f32 %v245, %v541
      %543 = vmatmul.f32.gmra.mxu0 %v336
      %v544 = vpop.f32.mrf.mxu0
      %v545 = vadd.f32 %v245, %v544
      %546 = vmatmul.f32.gmra.mxu0 %v339
      %v547 = vpop.f32.mrf.mxu0
      %v548 = vadd.f32 %v245, %v547
      %549 = vmatmul.f32.gmra.mxu0 %v342
      %v550 = vpop.f32.mrf.mxu0
      %v551 = vadd.f32 %v245, %v550
      %552 = vmatmul.f32.gmra.mxu0 %v345
      %v553 = vpop.f32.mrf.mxu0
      %v554 = vadd.f32 %v245, %v553
      %555 = vmatmul.f32.gmra.mxu0 %v348
      %v556 = vpop.f32.mrf.mxu0
      %v557 = vadd.f32 %v245, %v556
      %558 = vmatmul.f32.gmra.mxu0 %v351
      %v559 = vpop.f32.mrf.mxu0
      %v560 = vadd.f32 %v245, %v559
      %561 = vmatmul.f32.gmra.mxu0 %v354
      %v562 = vpop.f32.mrf.mxu0
      %v563 = vadd.f32 %v245, %v562
      %564 = vmatmul.f32.gmra.mxu0 %v357
      %v565 = vpop.f32.mrf.mxu0
      %v566 = vadd.f32 %v245, %v565
      %567 = vmatmul.f32.gmra.mxu0 %v360
      %v568 = vpop.f32.mrf.mxu0
      %v569 = vadd.f32 %v245, %v568
      %570 = vmatmul.f32.gmra.mxu0 %v363
      %v571 = vpop.f32.mrf.mxu0
      %v572 = vadd.f32 %v245, %v571
      %573 = vmatmul.f32.gmra.mxu0 %v366
      %v574 = vpop.f32.mrf.mxu0
      %v575 = vadd.f32 %v245, %v574
      %576 = vmatmul.f32.gmra.mxu0 %v369
      %v577 = vpop.f32.mrf.mxu0
      %v578 = vadd.f32 %v245, %v577
      %579 = vmatmul.f32.gmra.mxu0 %v372
      %v580 = vpop.f32.mrf.mxu0
      %v581 = vadd.f32 %v245, %v580
      %582 = vmatmul.f32.gmra.mxu0 %v375
      %v583 = vpop.f32.mrf.mxu0
      %v584 = vadd.f32 %v245, %v583
      %585 = vmatmul.f32.gmra.mxu0 %v378
      %v586 = vpop.f32.mrf.mxu0
      %v587 = vadd.f32 %v245, %v586
      %588 = vmatmul.f32.gmra.mxu0 %v381
      %v589 = vpop.f32.mrf.mxu0
      %v590 = vadd.f32 %v245, %v589
      %591 = vmatmul.f32.gmra.mxu0 %v384
      %v592 = vpop.f32.mrf.mxu0
      %v593 = vadd.f32 %v245, %v592
      %594 = vmatmul.f32.gmra.mxu0 %v387
      %v595 = vpop.f32.mrf.mxu0
      %v596 = vadd.f32 %v245, %v595
      %597 = vmatmul.f32.gmra.mxu0 %v390
      %v598 = vpop.f32.mrf.mxu0
      %v599 = vadd.f32 %v245, %v598
      %600 = vmatmul.f32.gmra.mxu0 %v393
      %v601 = vpop.f32.mrf.mxu0
      %v602 = vadd.f32 %v245, %v601
      %603 = vmatmul.f32.gmra.mxu0 %v396
      %v604 = vpop.f32.mrf.mxu0
      %v605 = vadd.f32 %v245, %v604
      %606 = vmatmul.f32.gmra.mxu0 %v399
      %v607 = vpop.f32.mrf.mxu0
      %v608 = vadd.f32 %v245, %v607
      %609 = vmatmul.f32.gmra.mxu0 %v402
      %v610 = vpop.f32.mrf.mxu0
      %v611 = vadd.f32 %v245, %v610
      %612 = vmatmul.f32.gmra.mxu0 %v405
      %v613 = vpop.f32.mrf.mxu0
      %v614 = vadd.f32 %v245, %v613
      %615 = vmatmul.f32.gmra.mxu0 %v408
      %v616 = vpop.f32.mrf.mxu0
      %v617 = vadd.f32 %v245, %v616
      %618 = vmatmul.f32.gmra.mxu0 %v411
      %v619 = vpop.f32.mrf.mxu0
      %v620 = vadd.f32 %v245, %v619
      %621 = vmatmul.f32.gmra.mxu0 %v414
      %v622 = vpop.f32.mrf.mxu0
      %v623 = vadd.f32 %v245, %v622
      %624 = vmatmul.f32.gmra.mxu0 %v417
      %v625 = vpop.f32.mrf.mxu0
      %v626 = vadd.f32 %v245, %v625
      %627 = vmatmul.f32.gmra.mxu0 %v420
      %v628 = vpop.f32.mrf.mxu0
      %v629 = vadd.f32 %v245, %v628
      %630 = vmatmul.f32.gmra.mxu0 %v423
      %v631 = vpop.f32.mrf.mxu0
      %v632 = vadd.f32 %v245, %v631
      %633 = vmatmul.f32.gmra.mxu0 %v426
      %v634 = vpop.f32.mrf.mxu0
      %v635 = vadd.f32 %v245, %v634
      %636 = vmatmul.f32.gmra.mxu0 %v429
      %v637 = vpop.f32.mrf.mxu0
      %v638 = vadd.f32 %v245, %v637
      %639 = vmatmul.f32.gmra.mxu0 %v432
      %v640 = vpop.f32.mrf.mxu0
      %v641 = vadd.f32 %v245, %v640
      %642 = vmatmul.f32.gmra.mxu0 %v435
      %v643 = vpop.f32.mrf.mxu0
      %v644 = vadd.f32 %v245, %v643
      %645 = vmatmul.f32.gmra.mxu0 %v438
      %v646 = vpop.f32.mrf.mxu0
      %v647 = vadd.f32 %v245, %v646
      %648 = vdwg.mxu0
      %v649 = vmax.f32 %v458, 0.0
      %v650 = vmax.f32 %v461, 0.0
      %v651 = vmax.f32 %v464, 0.0
      %v652 = vmax.f32 %v467, 0.0
      %v653 = vmax.f32 %v470, 0.0
      %v654 = vmax.f32 %v473, 0.0
      %v655 = vmax.f32 %v476, 0.0
      %v656 = vmax.f32 %v479, 0.0
      %v657 = vmax.f32 %v482, 0.0
      %v658 = vmax.f32 %v485, 0.0
      %v659 = vmax.f32 %v488, 0.0
      %v660 = vmax.f32 %v491, 0.0
      %v661 = vmax.f32 %v494, 0.0
      %v662 = vmax.f32 %v497, 0.0
      %v663 = vmax.f32 %v500, 0.0
      %v664 = vmax.f32 %v503, 0.0
      %v665 = vmax.f32 %v506, 0.0
      %v666 = vmax.f32 %v509, 0.0
      %v667 = vmax.f32 %v512, 0.0
      %v668 = vmax.f32 %v515, 0.0
      %v669 = vmax.f32 %v518, 0.0
      %v670 = vmax.f32 %v521, 0.0
      %v671 = vmax.f32 %v524, 0.0
      %v672 = vmax.f32 %v527, 0.0
      %v673 = vmax.f32 %v530, 0.0
      %v674 = vmax.f32 %v533, 0.0
      %v675 = vmax.f32 %v536, 0.0
      %v676 = vmax.f32 %v539, 0.0
      %v677 = vmax.f32 %v542, 0.0
      %v678 = vmax.f32 %v545, 0.0
      %v679 = vmax.f32 %v548, 0.0
      %v680 = vmax.f32 %v551, 0.0
      %v681 = vmax.f32 %v554, 0.0
      %v682 = vmax.f32 %v557, 0.0
      %v683 = vmax.f32 %v560, 0.0
      %v684 = vmax.f32 %v563, 0.0
      %v685 = vmax.f32 %v566, 0.0
      %v686 = vmax.f32 %v569, 0.0
      %v687 = vmax.f32 %v572, 0.0
      %v688 = vmax.f32 %v575, 0.0
      %v689 = vmax.f32 %v578, 0.0
      %v690 = vmax.f32 %v581, 0.0
      %v691 = vmax.f32 %v584, 0.0
      %v692 = vmax.f32 %v587, 0.0
      %v693 = vmax.f32 %v590, 0.0
      %v694 = vmax.f32 %v593, 0.0
      %v695 = vmax.f32 %v596, 0.0
      %v696 = vmax.f32 %v599, 0.0
      %v697 = vmax.f32 %v602, 0.0
      %v698 = vmax.f32 %v605, 0.0
      %v699 = vmax.f32 %v608, 0.0
      %v700 = vmax.f32 %v611, 0.0
      %v701 = vmax.f32 %v614, 0.0
      %v702 = vmax.f32 %v617, 0.0
      %v703 = vmax.f32 %v620, 0.0
      %v704 = vmax.f32 %v623, 0.0
      %v705 = vmax.f32 %v626, 0.0
      %v706 = vmax.f32 %v629, 0.0
      %v707 = vmax.f32 %v632, 0.0
      %v708 = vmax.f32 %v635, 0.0
      %v709 = vmax.f32 %v638, 0.0
      %v710 = vmax.f32 %v641, 0.0
      %v711 = vmax.f32 %v644, 0.0
      %v712 = vmax.f32 %v647, 0.0
      %s713 = scalar_lea.vmem %s1, 128
      %v714 = vld [vmem:[%s713] sm:$0xff]
      %v715 = vld [vmem:[%s713 + $0x8] sm:$0xff]
      %v716 = vld [vmem:[%s713 + $0x10] sm:$0xff]
      %v717 = vld [vmem:[%s713 + $0x18] sm:$0xff]
      %v718 = vld [vmem:[%s713 + $0x20] sm:$0xff]
      %v719 = vld [vmem:[%s713 + $0x28] sm:$0xff]
      %v720 = vld [vmem:[%s713 + $0x30] sm:$0xff]
      %v721 = vld [vmem:[%s713 + $0x38] sm:$0xff]
      %v722 = vld [vmem:[%s713 + $0x40] sm:$0xff]
      %v723 = vld [vmem:[%s713 + $0x48] sm:$0xff]
      %v724 = vld [vmem:[%s713 + $0x50] sm:$0xff]
      %v725 = vld [vmem:[%s713 + $0x58] sm:$0xff]
      %v726 = vld [vmem:[%s713 + $0x60] sm:$0xff]
      %v727 = vld [vmem:[%s713 + $0x68] sm:$0xff]
      %v728 = vld [vmem:[%s713 + $0x70] sm:$0xff]
      %v729 = vld [vmem:[%s713 + $0x78] sm:$0xff]
      %s730 = scalar_lea.vmem %s2, 1
      %v731 = vld [vmem:[%s730] sm:$0x1]
      %v733 = vperm.slane %v731, 0
      %735 = vmatpush.msra.mxu0 %v729
      %736 = vmatpush.msra.mxu0 %v728
      %737 = vmatpush.msra.mxu0 %v727
      %738 = vmatpush.msra.mxu0 %v726
      %739 = vmatpush.msra.mxu0 %v725
      %740 = vmatpush.msra.mxu0 %v724
      %741 = vmatpush.msra.mxu0 %v723
      %742 = vmatpush.msra.mxu0 %v722
      %743 = vmatpush.msra.mxu0 %v721
      %744 = vmatpush.msra.mxu0 %v720
      %745 = vmatpush.msra.mxu0 %v719
      %746 = vmatpush.msra.mxu0 %v718
      %747 = vmatpush.msra.mxu0 %v717
      %748 = vmatpush.msra.mxu0 %v716
      %749 = vmatpush.msra.mxu0 %v715
      %750 = vmatpush.msra.mxu0 %v714
      %751 = vmatmul.f32.gmra.mxu0 %v649
      %v752 = vpop.f32.mrf.mxu0
      %v753 = vadd.f32 %v733, %v752
      %754 = vmatmul.f32.gmra.mxu0 %v650
      %v755 = vpop.f32.mrf.mxu0
      %v756 = vadd.f32 %v733, %v755
      %757 = vmatmul.f32.gmra.mxu0 %v651
      %v758 = vpop.f32.mrf.mxu0
      %v759 = vadd.f32 %v733, %v758
      %760 = vmatmul.f32.gmra.mxu0 %v652
      %v761 = vpop.f32.mrf.mxu0
      %v762 = vadd.f32 %v733, %v761
      %763 = vmatmul.f32.gmra.mxu0 %v653
      %v764 = vpop.f32.mrf.mxu0
      %v765 = vadd.f32 %v733, %v764
      %766 = vmatmul.f32.gmra.mxu0 %v654
      %v767 = vpop.f32.mrf.mxu0
      %v768 = vadd.f32 %v733, %v767
      %769 = vmatmul.f32.gmra.mxu0 %v655
      %v770 = vpop.f32.mrf.mxu0
      %v771 = vadd.f32 %v733, %v770
      %772 = vmatmul.f32.gmra.mxu0 %v656
      %v773 = vpop.f32.mrf.mxu0
      %v774 = vadd.f32 %v733, %v773
      %775 = vmatmul.f32.gmra.mxu0 %v657
      %v776 = vpop.f32.mrf.mxu0
      %v777 = vadd.f32 %v733, %v776
      %778 = vmatmul.f32.gmra.mxu0 %v658
      %v779 = vpop.f32.mrf.mxu0
      %v780 = vadd.f32 %v733, %v779
      %781 = vmatmul.f32.gmra.mxu0 %v659
      %v782 = vpop.f32.mrf.mxu0
      %v783 = vadd.f32 %v733, %v782
      %784 = vmatmul.f32.gmra.mxu0 %v660
      %v785 = vpop.f32.mrf.mxu0
      %v786 = vadd.f32 %v733, %v785
      %787 = vmatmul.f32.gmra.mxu0 %v661
      %v788 = vpop.f32.mrf.mxu0
      %v789 = vadd.f32 %v733, %v788
      %790 = vmatmul.f32.gmra.mxu0 %v662
      %v791 = vpop.f32.mrf.mxu0
      %v792 = vadd.f32 %v733, %v791
      %793 = vmatmul.f32.gmra.mxu0 %v663
      %v794 = vpop.f32.mrf.mxu0
      %v795 = vadd.f32 %v733, %v794
      %796 = vmatmul.f32.gmra.mxu0 %v664
      %v797 = vpop.f32.mrf.mxu0
      %v798 = vadd.f32 %v733, %v797
      %799 = vmatmul.f32.gmra.mxu0 %v665
      %v800 = vpop.f32.mrf.mxu0
      %v801 = vadd.f32 %v733, %v800
      %802 = vmatmul.f32.gmra.mxu0 %v666
      %v803 = vpop.f32.mrf.mxu0
      %v804 = vadd.f32 %v733, %v803
      %805 = vmatmul.f32.gmra.mxu0 %v667
      %v806 = vpop.f32.mrf.mxu0
      %v807 = vadd.f32 %v733, %v806
      %808 = vmatmul.f32.gmra.mxu0 %v668
      %v809 = vpop.f32.mrf.mxu0
      %v810 = vadd.f32 %v733, %v809
      %811 = vmatmul.f32.gmra.mxu0 %v669
      %v812 = vpop.f32.mrf.mxu0
      %v813 = vadd.f32 %v733, %v812
      %814 = vmatmul.f32.gmra.mxu0 %v670
      %v815 = vpop.f32.mrf.mxu0
      %v816 = vadd.f32 %v733, %v815
      %817 = vmatmul.f32.gmra.mxu0 %v671
      %v818 = vpop.f32.mrf.mxu0
      %v819 = vadd.f32 %v733, %v818
      %820 = vmatmul.f32.gmra.mxu0 %v672
      %v821 = vpop.f32.mrf.mxu0
      %v822 = vadd.f32 %v733, %v821
      %823 = vmatmul.f32.gmra.mxu0 %v673
      %v824 = vpop.f32.mrf.mxu0
      %v825 = vadd.f32 %v733, %v824
      %826 = vmatmul.f32.gmra.mxu0 %v674
      %v827 = vpop.f32.mrf.mxu0
      %v828 = vadd.f32 %v733, %v827
      %829 = vmatmul.f32.gmra.mxu0 %v675
      %v830 = vpop.f32.mrf.mxu0
      %v831 = vadd.f32 %v733, %v830
      %832 = vmatmul.f32.gmra.mxu0 %v676
      %v833 = vpop.f32.mrf.mxu0
      %v834 = vadd.f32 %v733, %v833
      %835 = vmatmul.f32.gmra.mxu0 %v677
      %v836 = vpop.f32.mrf.mxu0
      %v837 = vadd.f32 %v733, %v836
      %838 = vmatmul.f32.gmra.mxu0 %v678
      %v839 = vpop.f32.mrf.mxu0
      %v840 = vadd.f32 %v733, %v839
      %841 = vmatmul.f32.gmra.mxu0 %v679
      %v842 = vpop.f32.mrf.mxu0
      %v843 = vadd.f32 %v733, %v842
      %844 = vmatmul.f32.gmra.mxu0 %v680
      %v845 = vpop.f32.mrf.mxu0
      %v846 = vadd.f32 %v733, %v845
      %847 = vmatmul.f32.gmra.mxu0 %v681
      %v848 = vpop.f32.mrf.mxu0
      %v849 = vadd.f32 %v733, %v848
      %850 = vmatmul.f32.gmra.mxu0 %v682
      %v851 = vpop.f32.mrf.mxu0
      %v852 = vadd.f32 %v733, %v851
      %853 = vmatmul.f32.gmra.mxu0 %v683
      %v854 = vpop.f32.mrf.mxu0
      %v855 = vadd.f32 %v733, %v854
      %856 = vmatmul.f32.gmra.mxu0 %v684
      %v857 = vpop.f32.mrf.mxu0
      %v858 = vadd.f32 %v733, %v857
      %859 = vmatmul.f32.gmra.mxu0 %v685
      %v860 = vpop.f32.mrf.mxu0
      %v861 = vadd.f32 %v733, %v860
      %862 = vmatmul.f32.gmra.mxu0 %v686
      %v863 = vpop.f32.mrf.mxu0
      %v864 = vadd.f32 %v733, %v863
      %865 = vmatmul.f32.gmra.mxu0 %v687
      %v866 = vpop.f32.mrf.mxu0
      %v867 = vadd.f32 %v733, %v866
      %868 = vmatmul.f32.gmra.mxu0 %v688
      %v869 = vpop.f32.mrf.mxu0
      %v870 = vadd.f32 %v733, %v869
      %871 = vmatmul.f32.gmra.mxu0 %v689
      %v872 = vpop.f32.mrf.mxu0
      %v873 = vadd.f32 %v733, %v872
      %874 = vmatmul.f32.gmra.mxu0 %v690
      %v875 = vpop.f32.mrf.mxu0
      %v876 = vadd.f32 %v733, %v875
      %877 = vmatmul.f32.gmra.mxu0 %v691
      %v878 = vpop.f32.mrf.mxu0
      %v879 = vadd.f32 %v733, %v878
      %880 = vmatmul.f32.gmra.mxu0 %v692
      %v881 = vpop.f32.mrf.mxu0
      %v882 = vadd.f32 %v733, %v881
      %883 = vmatmul.f32.gmra.mxu0 %v693
      %v884 = vpop.f32.mrf.mxu0
      %v885 = vadd.f32 %v733, %v884
      %886 = vmatmul.f32.gmra.mxu0 %v694
      %v887 = vpop.f32.mrf.mxu0
      %v888 = vadd.f32 %v733, %v887
      %889 = vmatmul.f32.gmra.mxu0 %v695
      %v890 = vpop.f32.mrf.mxu0
      %v891 = vadd.f32 %v733, %v890
      %892 = vmatmul.f32.gmra.mxu0 %v696
      %v893 = vpop.f32.mrf.mxu0
      %v894 = vadd.f32 %v733, %v893
      %895 = vmatmul.f32.gmra.mxu0 %v697
      %v896 = vpop.f32.mrf.mxu0
      %v897 = vadd.f32 %v733, %v896
      %898 = vmatmul.f32.gmra.mxu0 %v698
      %v899 = vpop.f32.mrf.mxu0
      %v900 = vadd.f32 %v733, %v899
      %901 = vmatmul.f32.gmra.mxu0 %v699
      %v902 = vpop.f32.mrf.mxu0
      %v903 = vadd.f32 %v733, %v902
      %904 = vmatmul.f32.gmra.mxu0 %v700
      %v905 = vpop.f32.mrf.mxu0
      %v906 = vadd.f32 %v733, %v905
      %907 = vmatmul.f32.gmra.mxu0 %v701
      %v908 = vpop.f32.mrf.mxu0
      %v909 = vadd.f32 %v733, %v908
      %910 = vmatmul.f32.gmra.mxu0 %v702
      %v911 = vpop.f32.mrf.mxu0
      %v912 = vadd.f32 %v733, %v911
      %913 = vmatmul.f32.gmra.mxu0 %v703
      %v914 = vpop.f32.mrf.mxu0
      %v915 = vadd.f32 %v733, %v914
      %916 = vmatmul.f32.gmra.mxu0 %v704
      %v917 = vpop.f32.mrf.mxu0
      %v918 = vadd.f32 %v733, %v917
      %919 = vmatmul.f32.gmra.mxu0 %v705
      %v920 = vpop.f32.mrf.mxu0
      %v921 = vadd.f32 %v733, %v920
      %922 = vmatmul.f32.gmra.mxu0 %v706
      %v923 = vpop.f32.mrf.mxu0
      %v924 = vadd.f32 %v733, %v923
      %925 = vmatmul.f32.gmra.mxu0 %v707
      %v926 = vpop.f32.mrf.mxu0
      %v927 = vadd.f32 %v733, %v926
      %928 = vmatmul.f32.gmra.mxu0 %v708
      %v929 = vpop.f32.mrf.mxu0
      %v930 = vadd.f32 %v733, %v929
      %931 = vmatmul.f32.gmra.mxu0 %v709
      %v932 = vpop.f32.mrf.mxu0
      %v933 = vadd.f32 %v733, %v932
      %934 = vmatmul.f32.gmra.mxu0 %v710
      %v935 = vpop.f32.mrf.mxu0
      %v936 = vadd.f32 %v733, %v935
      %937 = vmatmul.f32.gmra.mxu0 %v711
      %v938 = vpop.f32.mrf.mxu0
      %v939 = vadd.f32 %v733, %v938
      %940 = vmatmul.f32.gmra.mxu0 %v712
      %v941 = vpop.f32.mrf.mxu0
      %v942 = vadd.f32 %v733, %v941
      %943 = vdwg.mxu0
      %v944 = vmax.f32 %v753, 0.0
      %v945 = vmax.f32 %v756, 0.0
      %v946 = vmax.f32 %v759, 0.0
      %v947 = vmax.f32 %v762, 0.0
      %v948 = vmax.f32 %v765, 0.0
      %v949 = vmax.f32 %v768, 0.0
      %v950 = vmax.f32 %v771, 0.0
      %v951 = vmax.f32 %v774, 0.0
      %v952 = vmax.f32 %v777, 0.0
      %v953 = vmax.f32 %v780, 0.0
      %v954 = vmax.f32 %v783, 0.0
      %v955 = vmax.f32 %v786, 0.0
      %v956 = vmax.f32 %v789, 0.0
      %v957 = vmax.f32 %v792, 0.0
      %v958 = vmax.f32 %v795, 0.0
      %v959 = vmax.f32 %v798, 0.0
      %v960 = vmax.f32 %v801, 0.0
      %v961 = vmax.f32 %v804, 0.0
      %v962 = vmax.f32 %v807, 0.0
      %v963 = vmax.f32 %v810, 0.0
      %v964 = vmax.f32 %v813, 0.0
      %v965 = vmax.f32 %v816, 0.0
      %v966 = vmax.f32 %v819, 0.0
      %v967 = vmax.f32 %v822, 0.0
      %v968 = vmax.f32 %v825, 0.0
      %v969 = vmax.f32 %v828, 0.0
      %v970 = vmax.f32 %v831, 0.0
      %v971 = vmax.f32 %v834, 0.0
      %v972 = vmax.f32 %v837, 0.0
      %v973 = vmax.f32 %v840, 0.0
      %v974 = vmax.f32 %v843, 0.0
      %v975 = vmax.f32 %v846, 0.0
      %v976 = vmax.f32 %v849, 0.0
      %v977 = vmax.f32 %v852, 0.0
      %v978 = vmax.f32 %v855, 0.0
      %v979 = vmax.f32 %v858, 0.0
      %v980 = vmax.f32 %v861, 0.0
      %v981 = vmax.f32 %v864, 0.0
      %v982 = vmax.f32 %v867, 0.0
      %v983 = vmax.f32 %v870, 0.0
      %v984 = vmax.f32 %v873, 0.0
      %v985 = vmax.f32 %v876, 0.0
      %v986 = vmax.f32 %v879, 0.0
      %v987 = vmax.f32 %v882, 0.0
      %v988 = vmax.f32 %v885, 0.0
      %v989 = vmax.f32 %v888, 0.0
      %v990 = vmax.f32 %v891, 0.0
      %v991 = vmax.f32 %v894, 0.0
      %v992 = vmax.f32 %v897, 0.0
      %v993 = vmax.f32 %v900, 0.0
      %v994 = vmax.f32 %v903, 0.0
      %v995 = vmax.f32 %v906, 0.0
      %v996 = vmax.f32 %v909, 0.0
      %v997 = vmax.f32 %v912, 0.0
      %v998 = vmax.f32 %v915, 0.0
      %v999 = vmax.f32 %v918, 0.0
      %v1000 = vmax.f32 %v921, 0.0
      %v1001 = vmax.f32 %v924, 0.0
      %v1002 = vmax.f32 %v927, 0.0
      %v1003 = vmax.f32 %v930, 0.0
      %v1004 = vmax.f32 %v933, 0.0
      %v1005 = vmax.f32 %v936, 0.0
      %v1006 = vmax.f32 %v939, 0.0
      %v1007 = vmax.f32 %v942, 0.0
      %s1008 = scalar_lea.vmem %s1, 256
      %v1009 = vld [vmem:[%s1008] sm:$0xff]
      %v1010 = vld [vmem:[%s1008 + $0x8] sm:$0xff]
      %v1011 = vld [vmem:[%s1008 + $0x10] sm:$0xff]
      %v1012 = vld [vmem:[%s1008 + $0x18] sm:$0xff]
      %v1013 = vld [vmem:[%s1008 + $0x20] sm:$0xff]
      %v1014 = vld [vmem:[%s1008 + $0x28] sm:$0xff]
      %v1015 = vld [vmem:[%s1008 + $0x30] sm:$0xff]
      %v1016 = vld [vmem:[%s1008 + $0x38] sm:$0xff]
      %v1017 = vld [vmem:[%s1008 + $0x40] sm:$0xff]
      %v1018 = vld [vmem:[%s1008 + $0x48] sm:$0xff]
      %v1019 = vld [vmem:[%s1008 + $0x50] sm:$0xff]
      %v1020 = vld [vmem:[%s1008 + $0x58] sm:$0xff]
      %v1021 = vld [vmem:[%s1008 + $0x60] sm:$0xff]
      %v1022 = vld [vmem:[%s1008 + $0x68] sm:$0xff]
      %v1023 = vld [vmem:[%s1008 + $0x70] sm:$0xff]
      %v1024 = vld [vmem:[%s1008 + $0x78] sm:$0xff]
      %s1025 = scalar_lea.vmem %s2, 2
      %v1026 = vld [vmem:[%s1025] sm:$0x1]
      %v1028 = vperm.slane %v1026, 0
      %1030 = vmatpush.msra.mxu0 %v1024
      %1031 = vmatpush.msra.mxu0 %v1023
      %1032 = vmatpush.msra.mxu0 %v1022
      %1033 = vmatpush.msra.mxu0 %v1021
      %1034 = vmatpush.msra.mxu0 %v1020
      %1035 = vmatpush.msra.mxu0 %v1019
      %1036 = vmatpush.msra.mxu0 %v1018
      %1037 = vmatpush.msra.mxu0 %v1017
      %1038 = vmatpush.msra.mxu0 %v1016
      %1039 = vmatpush.msra.mxu0 %v1015
      %1040 = vmatpush.msra.mxu0 %v1014
      %1041 = vmatpush.msra.mxu0 %v1013
      %1042 = vmatpush.msra.mxu0 %v1012
      %1043 = vmatpush.msra.mxu0 %v1011
      %1044 = vmatpush.msra.mxu0 %v1010
      %1045 = vmatpush.msra.mxu0 %v1009
      %1046 = vmatmul.f32.gmra.mxu0 %v944
      %v1047 = vpop.f32.mrf.mxu0
      %v1048 = vadd.f32 %v1028, %v1047
      %1049 = vmatmul.f32.gmra.mxu0 %v945
      %v1050 = vpop.f32.mrf.mxu0
      %v1051 = vadd.f32 %v1028, %v1050
      %1052 = vmatmul.f32.gmra.mxu0 %v946
      %v1053 = vpop.f32.mrf.mxu0
      %v1054 = vadd.f32 %v1028, %v1053
      %1055 = vmatmul.f32.gmra.mxu0 %v947
      %v1056 = vpop.f32.mrf.mxu0
      %v1057 = vadd.f32 %v1028, %v1056
      %1058 = vmatmul.f32.gmra.mxu0 %v948
      %v1059 = vpop.f32.mrf.mxu0
      %v1060 = vadd.f32 %v1028, %v1059
      %1061 = vmatmul.f32.gmra.mxu0 %v949
      %v1062 = vpop.f32.mrf.mxu0
      %v1063 = vadd.f32 %v1028, %v1062
      %1064 = vmatmul.f32.gmra.mxu0 %v950
      %v1065 = vpop.f32.mrf.mxu0
      %v1066 = vadd.f32 %v1028, %v1065
      %1067 = vmatmul.f32.gmra.mxu0 %v951
      %v1068 = vpop.f32.mrf.mxu0
      %v1069 = vadd.f32 %v1028, %v1068
      %1070 = vmatmul.f32.gmra.mxu0 %v952
      %v1071 = vpop.f32.mrf.mxu0
      %v1072 = vadd.f32 %v1028, %v1071
      %1073 = vmatmul.f32.gmra.mxu0 %v953
      %v1074 = vpop.f32.mrf.mxu0
      %v1075 = vadd.f32 %v1028, %v1074
      %1076 = vmatmul.f32.gmra.mxu0 %v954
      %v1077 = vpop.f32.mrf.mxu0
      %v1078 = vadd.f32 %v1028, %v1077
      %1079 = vmatmul.f32.gmra.mxu0 %v955
      %v1080 = vpop.f32.mrf.mxu0
      %v1081 = vadd.f32 %v1028, %v1080
      %1082 = vmatmul.f32.gmra.mxu0 %v956
      %v1083 = vpop.f32.mrf.mxu0
      %v1084 = vadd.f32 %v1028, %v1083
      %1085 = vmatmul.f32.gmra.mxu0 %v957
      %v1086 = vpop.f32.mrf.mxu0
      %v1087 = vadd.f32 %v1028, %v1086
      %1088 = vmatmul.f32.gmra.mxu0 %v958
      %v1089 = vpop.f32.mrf.mxu0
      %v1090 = vadd.f32 %v1028, %v1089
      %1091 = vmatmul.f32.gmra.mxu0 %v959
      %v1092 = vpop.f32.mrf.mxu0
      %v1093 = vadd.f32 %v1028, %v1092
      %1094 = vmatmul.f32.gmra.mxu0 %v960
      %v1095 = vpop.f32.mrf.mxu0
      %v1096 = vadd.f32 %v1028, %v1095
      %1097 = vmatmul.f32.gmra.mxu0 %v961
      %v1098 = vpop.f32.mrf.mxu0
      %v1099 = vadd.f32 %v1028, %v1098
      %1100 = vmatmul.f32.gmra.mxu0 %v962
      %v1101 = vpop.f32.mrf.mxu0
      %v1102 = vadd.f32 %v1028, %v1101
      %1103 = vmatmul.f32.gmra.mxu0 %v963
      %v1104 = vpop.f32.mrf.mxu0
      %v1105 = vadd.f32 %v1028, %v1104
      %1106 = vmatmul.f32.gmra.mxu0 %v964
      %v1107 = vpop.f32.mrf.mxu0
      %v1108 = vadd.f32 %v1028, %v1107
      %1109 = vmatmul.f32.gmra.mxu0 %v965
      %v1110 = vpop.f32.mrf.mxu0
      %v1111 = vadd.f32 %v1028, %v1110
      %1112 = vmatmul.f32.gmra.mxu0 %v966
      %v1113 = vpop.f32.mrf.mxu0
      %v1114 = vadd.f32 %v1028, %v1113
      %1115 = vmatmul.f32.gmra.mxu0 %v967
      %v1116 = vpop.f32.mrf.mxu0
      %v1117 = vadd.f32 %v1028, %v1116
      %1118 = vmatmul.f32.gmra.mxu0 %v968
      %v1119 = vpop.f32.mrf.mxu0
      %v1120 = vadd.f32 %v1028, %v1119
      %1121 = vmatmul.f32.gmra.mxu0 %v969
      %v1122 = vpop.f32.mrf.mxu0
      %v1123 = vadd.f32 %v1028, %v1122
      %1124 = vmatmul.f32.gmra.mxu0 %v970
      %v1125 = vpop.f32.mrf.mxu0
      %v1126 = vadd.f32 %v1028, %v1125
      %1127 = vmatmul.f32.gmra.mxu0 %v971
      %v1128 = vpop.f32.mrf.mxu0
      %v1129 = vadd.f32 %v1028, %v1128
      %1130 = vmatmul.f32.gmra.mxu0 %v972
      %v1131 = vpop.f32.mrf.mxu0
      %v1132 = vadd.f32 %v1028, %v1131
      %1133 = vmatmul.f32.gmra.mxu0 %v973
      %v1134 = vpop.f32.mrf.mxu0
      %v1135 = vadd.f32 %v1028, %v1134
      %1136 = vmatmul.f32.gmra.mxu0 %v974
      %v1137 = vpop.f32.mrf.mxu0
      %v1138 = vadd.f32 %v1028, %v1137
      %1139 = vmatmul.f32.gmra.mxu0 %v975
      %v1140 = vpop.f32.mrf.mxu0
      %v1141 = vadd.f32 %v1028, %v1140
      %1142 = vmatmul.f32.gmra.mxu0 %v976
      %v1143 = vpop.f32.mrf.mxu0
      %v1144 = vadd.f32 %v1028, %v1143
      %1145 = vmatmul.f32.gmra.mxu0 %v977
      %v1146 = vpop.f32.mrf.mxu0
      %v1147 = vadd.f32 %v1028, %v1146
      %1148 = vmatmul.f32.gmra.mxu0 %v978
      %v1149 = vpop.f32.mrf.mxu0
      %v1150 = vadd.f32 %v1028, %v1149
      %1151 = vmatmul.f32.gmra.mxu0 %v979
      %v1152 = vpop.f32.mrf.mxu0
      %v1153 = vadd.f32 %v1028, %v1152
      %1154 = vmatmul.f32.gmra.mxu0 %v980
      %v1155 = vpop.f32.mrf.mxu0
      %v1156 = vadd.f32 %v1028, %v1155
      %1157 = vmatmul.f32.gmra.mxu0 %v981
      %v1158 = vpop.f32.mrf.mxu0
      %v1159 = vadd.f32 %v1028, %v1158
      %1160 = vmatmul.f32.gmra.mxu0 %v982
      %v1161 = vpop.f32.mrf.mxu0
      %v1162 = vadd.f32 %v1028, %v1161
      %1163 = vmatmul.f32.gmra.mxu0 %v983
      %v1164 = vpop.f32.mrf.mxu0
      %v1165 = vadd.f32 %v1028, %v1164
      %1166 = vmatmul.f32.gmra.mxu0 %v984
      %v1167 = vpop.f32.mrf.mxu0
      %v1168 = vadd.f32 %v1028, %v1167
      %1169 = vmatmul.f32.gmra.mxu0 %v985
      %v1170 = vpop.f32.mrf.mxu0
      %v1171 = vadd.f32 %v1028, %v1170
      %1172 = vmatmul.f32.gmra.mxu0 %v986
      %v1173 = vpop.f32.mrf.mxu0
      %v1174 = vadd.f32 %v1028, %v1173
      %1175 = vmatmul.f32.gmra.mxu0 %v987
      %v1176 = vpop.f32.mrf.mxu0
      %v1177 = vadd.f32 %v1028, %v1176
      %1178 = vmatmul.f32.gmra.mxu0 %v988
      %v1179 = vpop.f32.mrf.mxu0
      %v1180 = vadd.f32 %v1028, %v1179
      %1181 = vmatmul.f32.gmra.mxu0 %v989
      %v1182 = vpop.f32.mrf.mxu0
      %v1183 = vadd.f32 %v1028, %v1182
      %1184 = vmatmul.f32.gmra.mxu0 %v990
      %v1185 = vpop.f32.mrf.mxu0
      %v1186 = vadd.f32 %v1028, %v1185
      %1187 = vmatmul.f32.gmra.mxu0 %v991
      %v1188 = vpop.f32.mrf.mxu0
      %v1189 = vadd.f32 %v1028, %v1188
      %1190 = vmatmul.f32.gmra.mxu0 %v992
      %v1191 = vpop.f32.mrf.mxu0
      %v1192 = vadd.f32 %v1028, %v1191
      %1193 = vmatmul.f32.gmra.mxu0 %v993
      %v1194 = vpop.f32.mrf.mxu0
      %v1195 = vadd.f32 %v1028, %v1194
      %1196 = vmatmul.f32.gmra.mxu0 %v994
      %v1197 = vpop.f32.mrf.mxu0
      %v1198 = vadd.f32 %v1028, %v1197
      %1199 = vmatmul.f32.gmra.mxu0 %v995
      %v1200 = vpop.f32.mrf.mxu0
      %v1201 = vadd.f32 %v1028, %v1200
      %1202 = vmatmul.f32.gmra.mxu0 %v996
      %v1203 = vpop.f32.mrf.mxu0
      %v1204 = vadd.f32 %v1028, %v1203
      %1205 = vmatmul.f32.gmra.mxu0 %v997
      %v1206 = vpop.f32.mrf.mxu0
      %v1207 = vadd.f32 %v1028, %v1206
      %1208 = vmatmul.f32.gmra.mxu0 %v998
      %v1209 = vpop.f32.mrf.mxu0
      %v1210 = vadd.f32 %v1028, %v1209
      %1211 = vmatmul.f32.gmra.mxu0 %v999
      %v1212 = vpop.f32.mrf.mxu0
      %v1213 = vadd.f32 %v1028, %v1212
      %1214 = vmatmul.f32.gmra.mxu0 %v1000
      %v1215 = vpop.f32.mrf.mxu0
      %v1216 = vadd.f32 %v1028, %v1215
      %1217 = vmatmul.f32.gmra.mxu0 %v1001
      %v1218 = vpop.f32.mrf.mxu0
      %v1219 = vadd.f32 %v1028, %v1218
      %1220 = vmatmul.f32.gmra.mxu0 %v1002
      %v1221 = vpop.f32.mrf.mxu0
      %v1222 = vadd.f32 %v1028, %v1221
      %1223 = vmatmul.f32.gmra.mxu0 %v1003
      %v1224 = vpop.f32.mrf.mxu0
      %v1225 = vadd.f32 %v1028, %v1224
      %1226 = vmatmul.f32.gmra.mxu0 %v1004
      %v1227 = vpop.f32.mrf.mxu0
      %v1228 = vadd.f32 %v1028, %v1227
      %1229 = vmatmul.f32.gmra.mxu0 %v1005
      %v1230 = vpop.f32.mrf.mxu0
      %v1231 = vadd.f32 %v1028, %v1230
      %1232 = vmatmul.f32.gmra.mxu0 %v1006
      %v1233 = vpop.f32.mrf.mxu0
      %v1234 = vadd.f32 %v1028, %v1233
      %1235 = vmatmul.f32.gmra.mxu0 %v1007
      %v1236 = vpop.f32.mrf.mxu0
      %v1237 = vadd.f32 %v1028, %v1236
      %1238 = vdwg.mxu0
      %v1239 = vmax.f32 %v1048, 0.0
      %v1240 = vmax.f32 %v1051, 0.0
      %v1241 = vmax.f32 %v1054, 0.0
      %v1242 = vmax.f32 %v1057, 0.0
      %v1243 = vmax.f32 %v1060, 0.0
      %v1244 = vmax.f32 %v1063, 0.0
      %v1245 = vmax.f32 %v1066, 0.0
      %v1246 = vmax.f32 %v1069, 0.0
      %v1247 = vmax.f32 %v1072, 0.0
      %v1248 = vmax.f32 %v1075, 0.0
      %v1249 = vmax.f32 %v1078, 0.0
      %v1250 = vmax.f32 %v1081, 0.0
      %v1251 = vmax.f32 %v1084, 0.0
      %v1252 = vmax.f32 %v1087, 0.0
      %v1253 = vmax.f32 %v1090, 0.0
      %v1254 = vmax.f32 %v1093, 0.0
      %v1255 = vmax.f32 %v1096, 0.0
      %v1256 = vmax.f32 %v1099, 0.0
      %v1257 = vmax.f32 %v1102, 0.0
      %v1258 = vmax.f32 %v1105, 0.0
      %v1259 = vmax.f32 %v1108, 0.0
      %v1260 = vmax.f32 %v1111, 0.0
      %v1261 = vmax.f32 %v1114, 0.0
      %v1262 = vmax.f32 %v1117, 0.0
      %v1263 = vmax.f32 %v1120, 0.0
      %v1264 = vmax.f32 %v1123, 0.0
      %v1265 = vmax.f32 %v1126, 0.0
      %v1266 = vmax.f32 %v1129, 0.0
      %v1267 = vmax.f32 %v1132, 0.0
      %v1268 = vmax.f32 %v1135, 0.0
      %v1269 = vmax.f32 %v1138, 0.0
      %v1270 = vmax.f32 %v1141, 0.0
      %v1271 = vmax.f32 %v1144, 0.0
      %v1272 = vmax.f32 %v1147, 0.0
      %v1273 = vmax.f32 %v1150, 0.0
      %v1274 = vmax.f32 %v1153, 0.0
      %v1275 = vmax.f32 %v1156, 0.0
      %v1276 = vmax.f32 %v1159, 0.0
      %v1277 = vmax.f32 %v1162, 0.0
      %v1278 = vmax.f32 %v1165, 0.0
      %v1279 = vmax.f32 %v1168, 0.0
      %v1280 = vmax.f32 %v1171, 0.0
      %v1281 = vmax.f32 %v1174, 0.0
      %v1282 = vmax.f32 %v1177, 0.0
      %v1283 = vmax.f32 %v1180, 0.0
      %v1284 = vmax.f32 %v1183, 0.0
      %v1285 = vmax.f32 %v1186, 0.0
      %v1286 = vmax.f32 %v1189, 0.0
      %v1287 = vmax.f32 %v1192, 0.0
      %v1288 = vmax.f32 %v1195, 0.0
      %v1289 = vmax.f32 %v1198, 0.0
      %v1290 = vmax.f32 %v1201, 0.0
      %v1291 = vmax.f32 %v1204, 0.0
      %v1292 = vmax.f32 %v1207, 0.0
      %v1293 = vmax.f32 %v1210, 0.0
      %v1294 = vmax.f32 %v1213, 0.0
      %v1295 = vmax.f32 %v1216, 0.0
      %v1296 = vmax.f32 %v1219, 0.0
      %v1297 = vmax.f32 %v1222, 0.0
      %v1298 = vmax.f32 %v1225, 0.0
      %v1299 = vmax.f32 %v1228, 0.0
      %v1300 = vmax.f32 %v1231, 0.0
      %v1301 = vmax.f32 %v1234, 0.0
      %v1302 = vmax.f32 %v1237, 0.0
      %s1303 = scalar_lea.vmem %s1, 384
      %v1304 = vld [vmem:[%s1303] sm:$0xff]
      %v1305 = vld [vmem:[%s1303 + $0x8] sm:$0xff]
      %v1306 = vld [vmem:[%s1303 + $0x10] sm:$0xff]
      %v1307 = vld [vmem:[%s1303 + $0x18] sm:$0xff]
      %v1308 = vld [vmem:[%s1303 + $0x20] sm:$0xff]
      %v1309 = vld [vmem:[%s1303 + $0x28] sm:$0xff]
      %v1310 = vld [vmem:[%s1303 + $0x30] sm:$0xff]
      %v1311 = vld [vmem:[%s1303 + $0x38] sm:$0xff]
      %v1312 = vld [vmem:[%s1303 + $0x40] sm:$0xff]
      %v1313 = vld [vmem:[%s1303 + $0x48] sm:$0xff]
      %v1314 = vld [vmem:[%s1303 + $0x50] sm:$0xff]
      %v1315 = vld [vmem:[%s1303 + $0x58] sm:$0xff]
      %v1316 = vld [vmem:[%s1303 + $0x60] sm:$0xff]
      %v1317 = vld [vmem:[%s1303 + $0x68] sm:$0xff]
      %v1318 = vld [vmem:[%s1303 + $0x70] sm:$0xff]
      %v1319 = vld [vmem:[%s1303 + $0x78] sm:$0xff]
      %s1320 = scalar_lea.vmem %s2, 3
      %v1321 = vld [vmem:[%s1320] sm:$0x1]
      %v1323 = vperm.slane %v1321, 0
      %1325 = vmatpush.msra.mxu0 %v1319
      %1326 = vmatpush.msra.mxu0 %v1318
      %1327 = vmatpush.msra.mxu0 %v1317
      %1328 = vmatpush.msra.mxu0 %v1316
      %1329 = vmatpush.msra.mxu0 %v1315
      %1330 = vmatpush.msra.mxu0 %v1314
      %1331 = vmatpush.msra.mxu0 %v1313
      %1332 = vmatpush.msra.mxu0 %v1312
      %1333 = vmatpush.msra.mxu0 %v1311
      %1334 = vmatpush.msra.mxu0 %v1310
      %1335 = vmatpush.msra.mxu0 %v1309
      %1336 = vmatpush.msra.mxu0 %v1308
      %1337 = vmatpush.msra.mxu0 %v1307
      %1338 = vmatpush.msra.mxu0 %v1306
      %1339 = vmatpush.msra.mxu0 %v1305
      %1340 = vmatpush.msra.mxu0 %v1304
      %1341 = vmatmul.f32.gmra.mxu0 %v1239
      %v1342 = vpop.f32.mrf.mxu0
      %v1343 = vadd.f32 %v1323, %v1342
      %1344 = vmatmul.f32.gmra.mxu0 %v1240
      %v1345 = vpop.f32.mrf.mxu0
      %v1346 = vadd.f32 %v1323, %v1345
      %1347 = vmatmul.f32.gmra.mxu0 %v1241
      %v1348 = vpop.f32.mrf.mxu0
      %v1349 = vadd.f32 %v1323, %v1348
      %1350 = vmatmul.f32.gmra.mxu0 %v1242
      %v1351 = vpop.f32.mrf.mxu0
      %v1352 = vadd.f32 %v1323, %v1351
      %1353 = vmatmul.f32.gmra.mxu0 %v1243
      %v1354 = vpop.f32.mrf.mxu0
      %v1355 = vadd.f32 %v1323, %v1354
      %1356 = vmatmul.f32.gmra.mxu0 %v1244
      %v1357 = vpop.f32.mrf.mxu0
      %v1358 = vadd.f32 %v1323, %v1357
      %1359 = vmatmul.f32.gmra.mxu0 %v1245
      %v1360 = vpop.f32.mrf.mxu0
      %v1361 = vadd.f32 %v1323, %v1360
      %1362 = vmatmul.f32.gmra.mxu0 %v1246
      %v1363 = vpop.f32.mrf.mxu0
      %v1364 = vadd.f32 %v1323, %v1363
      %1365 = vmatmul.f32.gmra.mxu0 %v1247
      %v1366 = vpop.f32.mrf.mxu0
      %v1367 = vadd.f32 %v1323, %v1366
      %1368 = vmatmul.f32.gmra.mxu0 %v1248
      %v1369 = vpop.f32.mrf.mxu0
      %v1370 = vadd.f32 %v1323, %v1369
      %1371 = vmatmul.f32.gmra.mxu0 %v1249
      %v1372 = vpop.f32.mrf.mxu0
      %v1373 = vadd.f32 %v1323, %v1372
      %1374 = vmatmul.f32.gmra.mxu0 %v1250
      %v1375 = vpop.f32.mrf.mxu0
      %v1376 = vadd.f32 %v1323, %v1375
      %1377 = vmatmul.f32.gmra.mxu0 %v1251
      %v1378 = vpop.f32.mrf.mxu0
      %v1379 = vadd.f32 %v1323, %v1378
      %1380 = vmatmul.f32.gmra.mxu0 %v1252
      %v1381 = vpop.f32.mrf.mxu0
      %v1382 = vadd.f32 %v1323, %v1381
      %1383 = vmatmul.f32.gmra.mxu0 %v1253
      %v1384 = vpop.f32.mrf.mxu0
      %v1385 = vadd.f32 %v1323, %v1384
      %1386 = vmatmul.f32.gmra.mxu0 %v1254
      %v1387 = vpop.f32.mrf.mxu0
      %v1388 = vadd.f32 %v1323, %v1387
      %1389 = vmatmul.f32.gmra.mxu0 %v1255
      %v1390 = vpop.f32.mrf.mxu0
      %v1391 = vadd.f32 %v1323, %v1390
      %1392 = vmatmul.f32.gmra.mxu0 %v1256
      %v1393 = vpop.f32.mrf.mxu0
      %v1394 = vadd.f32 %v1323, %v1393
      %1395 = vmatmul.f32.gmra.mxu0 %v1257
      %v1396 = vpop.f32.mrf.mxu0
      %v1397 = vadd.f32 %v1323, %v1396
      %1398 = vmatmul.f32.gmra.mxu0 %v1258
      %v1399 = vpop.f32.mrf.mxu0
      %v1400 = vadd.f32 %v1323, %v1399
      %1401 = vmatmul.f32.gmra.mxu0 %v1259
      %v1402 = vpop.f32.mrf.mxu0
      %v1403 = vadd.f32 %v1323, %v1402
      %1404 = vmatmul.f32.gmra.mxu0 %v1260
      %v1405 = vpop.f32.mrf.mxu0
      %v1406 = vadd.f32 %v1323, %v1405
      %1407 = vmatmul.f32.gmra.mxu0 %v1261
      %v1408 = vpop.f32.mrf.mxu0
      %v1409 = vadd.f32 %v1323, %v1408
      %1410 = vmatmul.f32.gmra.mxu0 %v1262
      %v1411 = vpop.f32.mrf.mxu0
      %v1412 = vadd.f32 %v1323, %v1411
      %1413 = vmatmul.f32.gmra.mxu0 %v1263
      %v1414 = vpop.f32.mrf.mxu0
      %v1415 = vadd.f32 %v1323, %v1414
      %1416 = vmatmul.f32.gmra.mxu0 %v1264
      %v1417 = vpop.f32.mrf.mxu0
      %v1418 = vadd.f32 %v1323, %v1417
      %1419 = vmatmul.f32.gmra.mxu0 %v1265
      %v1420 = vpop.f32.mrf.mxu0
      %v1421 = vadd.f32 %v1323, %v1420
      %1422 = vmatmul.f32.gmra.mxu0 %v1266
      %v1423 = vpop.f32.mrf.mxu0
      %v1424 = vadd.f32 %v1323, %v1423
      %1425 = vmatmul.f32.gmra.mxu0 %v1267
      %v1426 = vpop.f32.mrf.mxu0
      %v1427 = vadd.f32 %v1323, %v1426
      %1428 = vmatmul.f32.gmra.mxu0 %v1268
      %v1429 = vpop.f32.mrf.mxu0
      %v1430 = vadd.f32 %v1323, %v1429
      %1431 = vmatmul.f32.gmra.mxu0 %v1269
      %v1432 = vpop.f32.mrf.mxu0
      %v1433 = vadd.f32 %v1323, %v1432
      %1434 = vmatmul.f32.gmra.mxu0 %v1270
      %v1435 = vpop.f32.mrf.mxu0
      %v1436 = vadd.f32 %v1323, %v1435
      %1437 = vmatmul.f32.gmra.mxu0 %v1271
      %v1438 = vpop.f32.mrf.mxu0
      %v1439 = vadd.f32 %v1323, %v1438
      %1440 = vmatmul.f32.gmra.mxu0 %v1272
      %v1441 = vpop.f32.mrf.mxu0
      %v1442 = vadd.f32 %v1323, %v1441
      %1443 = vmatmul.f32.gmra.mxu0 %v1273
      %v1444 = vpop.f32.mrf.mxu0
      %v1445 = vadd.f32 %v1323, %v1444
      %1446 = vmatmul.f32.gmra.mxu0 %v1274
      %v1447 = vpop.f32.mrf.mxu0
      %v1448 = vadd.f32 %v1323, %v1447
      %1449 = vmatmul.f32.gmra.mxu0 %v1275
      %v1450 = vpop.f32.mrf.mxu0
      %v1451 = vadd.f32 %v1323, %v1450
      %1452 = vmatmul.f32.gmra.mxu0 %v1276
      %v1453 = vpop.f32.mrf.mxu0
      %v1454 = vadd.f32 %v1323, %v1453
      %1455 = vmatmul.f32.gmra.mxu0 %v1277
      %v1456 = vpop.f32.mrf.mxu0
      %v1457 = vadd.f32 %v1323, %v1456
      %1458 = vmatmul.f32.gmra.mxu0 %v1278
      %v1459 = vpop.f32.mrf.mxu0
      %v1460 = vadd.f32 %v1323, %v1459
      %1461 = vmatmul.f32.gmra.mxu0 %v1279
      %v1462 = vpop.f32.mrf.mxu0
      %v1463 = vadd.f32 %v1323, %v1462
      %1464 = vmatmul.f32.gmra.mxu0 %v1280
      %v1465 = vpop.f32.mrf.mxu0
      %v1466 = vadd.f32 %v1323, %v1465
      %1467 = vmatmul.f32.gmra.mxu0 %v1281
      %v1468 = vpop.f32.mrf.mxu0
      %v1469 = vadd.f32 %v1323, %v1468
      %1470 = vmatmul.f32.gmra.mxu0 %v1282
      %v1471 = vpop.f32.mrf.mxu0
      %v1472 = vadd.f32 %v1323, %v1471
      %1473 = vmatmul.f32.gmra.mxu0 %v1283
      %v1474 = vpop.f32.mrf.mxu0
      %v1475 = vadd.f32 %v1323, %v1474
      %1476 = vmatmul.f32.gmra.mxu0 %v1284
      %v1477 = vpop.f32.mrf.mxu0
      %v1478 = vadd.f32 %v1323, %v1477
      %1479 = vmatmul.f32.gmra.mxu0 %v1285
      %v1480 = vpop.f32.mrf.mxu0
      %v1481 = vadd.f32 %v1323, %v1480
      %1482 = vmatmul.f32.gmra.mxu0 %v1286
      %v1483 = vpop.f32.mrf.mxu0
      %v1484 = vadd.f32 %v1323, %v1483
      %1485 = vmatmul.f32.gmra.mxu0 %v1287
      %v1486 = vpop.f32.mrf.mxu0
      %v1487 = vadd.f32 %v1323, %v1486
      %1488 = vmatmul.f32.gmra.mxu0 %v1288
      %v1489 = vpop.f32.mrf.mxu0
      %v1490 = vadd.f32 %v1323, %v1489
      %1491 = vmatmul.f32.gmra.mxu0 %v1289
      %v1492 = vpop.f32.mrf.mxu0
      %v1493 = vadd.f32 %v1323, %v1492
      %1494 = vmatmul.f32.gmra.mxu0 %v1290
      %v1495 = vpop.f32.mrf.mxu0
      %v1496 = vadd.f32 %v1323, %v1495
      %1497 = vmatmul.f32.gmra.mxu0 %v1291
      %v1498 = vpop.f32.mrf.mxu0
      %v1499 = vadd.f32 %v1323, %v1498
      %1500 = vmatmul.f32.gmra.mxu0 %v1292
      %v1501 = vpop.f32.mrf.mxu0
      %v1502 = vadd.f32 %v1323, %v1501
      %1503 = vmatmul.f32.gmra.mxu0 %v1293
      %v1504 = vpop.f32.mrf.mxu0
      %v1505 = vadd.f32 %v1323, %v1504
      %1506 = vmatmul.f32.gmra.mxu0 %v1294
      %v1507 = vpop.f32.mrf.mxu0
      %v1508 = vadd.f32 %v1323, %v1507
      %1509 = vmatmul.f32.gmra.mxu0 %v1295
      %v1510 = vpop.f32.mrf.mxu0
      %v1511 = vadd.f32 %v1323, %v1510
      %1512 = vmatmul.f32.gmra.mxu0 %v1296
      %v1513 = vpop.f32.mrf.mxu0
      %v1514 = vadd.f32 %v1323, %v1513
      %1515 = vmatmul.f32.gmra.mxu0 %v1297
      %v1516 = vpop.f32.mrf.mxu0
      %v1517 = vadd.f32 %v1323, %v1516
      %1518 = vmatmul.f32.gmra.mxu0 %v1298
      %v1519 = vpop.f32.mrf.mxu0
      %v1520 = vadd.f32 %v1323, %v1519
      %1521 = vmatmul.f32.gmra.mxu0 %v1299
      %v1522 = vpop.f32.mrf.mxu0
      %v1523 = vadd.f32 %v1323, %v1522
      %1524 = vmatmul.f32.gmra.mxu0 %v1300
      %v1525 = vpop.f32.mrf.mxu0
      %v1526 = vadd.f32 %v1323, %v1525
      %1527 = vmatmul.f32.gmra.mxu0 %v1301
      %v1528 = vpop.f32.mrf.mxu0
      %v1529 = vadd.f32 %v1323, %v1528
      %1530 = vmatmul.f32.gmra.mxu0 %v1302
      %v1531 = vpop.f32.mrf.mxu0
      %v1532 = vadd.f32 %v1323, %v1531
      %1533 = vdwg.mxu0
      %vm1534 = vcmask 15360
      %1535 = vst.msk [vmem:[%s172] sm:$0xff] %vm1534, %v1343
      %1536 = vst.msk [vmem:[%s172 + $0x8] sm:$0xff] %vm1534, %v1346
      %1537 = vst.msk [vmem:[%s172 + $0x10] sm:$0xff] %vm1534, %v1349
      %1538 = vst.msk [vmem:[%s172 + $0x18] sm:$0xff] %vm1534, %v1352
      %1539 = vst.msk [vmem:[%s172 + $0x20] sm:$0xff] %vm1534, %v1355
      %1540 = vst.msk [vmem:[%s172 + $0x28] sm:$0xff] %vm1534, %v1358
      %1541 = vst.msk [vmem:[%s172 + $0x30] sm:$0xff] %vm1534, %v1361
      %1542 = vst.msk [vmem:[%s172 + $0x38] sm:$0xff] %vm1534, %v1364
      %1543 = vst.msk [vmem:[%s172 + $0x40] sm:$0xff] %vm1534, %v1367
      %1544 = vst.msk [vmem:[%s172 + $0x48] sm:$0xff] %vm1534, %v1370
      %1545 = vst.msk [vmem:[%s172 + $0x50] sm:$0xff] %vm1534, %v1373
      %1546 = vst.msk [vmem:[%s172 + $0x58] sm:$0xff] %vm1534, %v1376
      %1547 = vst.msk [vmem:[%s172 + $0x60] sm:$0xff] %vm1534, %v1379
      %1548 = vst.msk [vmem:[%s172 + $0x68] sm:$0xff] %vm1534, %v1382
      %1549 = vst.msk [vmem:[%s172 + $0x70] sm:$0xff] %vm1534, %v1385
      %1550 = vst.msk [vmem:[%s172 + $0x78] sm:$0xff] %vm1534, %v1388
      %1551 = vst.msk [vmem:[%s172 + $0x80] sm:$0xff] %vm1534, %v1391
      %1552 = vst.msk [vmem:[%s172 + $0x88] sm:$0xff] %vm1534, %v1394
      %1553 = vst.msk [vmem:[%s172 + $0x90] sm:$0xff] %vm1534, %v1397
      %1554 = vst.msk [vmem:[%s172 + $0x98] sm:$0xff] %vm1534, %v1400
      %1555 = vst.msk [vmem:[%s172 + $0xa0] sm:$0xff] %vm1534, %v1403
      %1556 = vst.msk [vmem:[%s172 + $0xa8] sm:$0xff] %vm1534, %v1406
      %1557 = vst.msk [vmem:[%s172 + $0xb0] sm:$0xff] %vm1534, %v1409
      %1558 = vst.msk [vmem:[%s172 + $0xb8] sm:$0xff] %vm1534, %v1412
      %1559 = vst.msk [vmem:[%s172 + $0xc0] sm:$0xff] %vm1534, %v1415
      %1560 = vst.msk [vmem:[%s172 + $0xc8] sm:$0xff] %vm1534, %v1418
      %1561 = vst.msk [vmem:[%s172 + $0xd0] sm:$0xff] %vm1534, %v1421
      %1562 = vst.msk [vmem:[%s172 + $0xd8] sm:$0xff] %vm1534, %v1424
      %1563 = vst.msk [vmem:[%s172 + $0xe0] sm:$0xff] %vm1534, %v1427
      %1564 = vst.msk [vmem:[%s172 + $0xe8] sm:$0xff] %vm1534, %v1430
      %1565 = vst.msk [vmem:[%s172 + $0xf0] sm:$0xff] %vm1534, %v1433
      %1566 = vst.msk [vmem:[%s172 + $0xf8] sm:$0xff] %vm1534, %v1436
      %1567 = vst.msk [vmem:[%s172 + $0x100] sm:$0xff] %vm1534, %v1439
      %1568 = vst.msk [vmem:[%s172 + $0x108] sm:$0xff] %vm1534, %v1442
      %1569 = vst.msk [vmem:[%s172 + $0x110] sm:$0xff] %vm1534, %v1445
      %1570 = vst.msk [vmem:[%s172 + $0x118] sm:$0xff] %vm1534, %v1448
      %1571 = vst.msk [vmem:[%s172 + $0x120] sm:$0xff] %vm1534, %v1451
      %1572 = vst.msk [vmem:[%s172 + $0x128] sm:$0xff] %vm1534, %v1454
      %1573 = vst.msk [vmem:[%s172 + $0x130] sm:$0xff] %vm1534, %v1457
      %1574 = vst.msk [vmem:[%s172 + $0x138] sm:$0xff] %vm1534, %v1460
      %1575 = vst.msk [vmem:[%s172 + $0x140] sm:$0xff] %vm1534, %v1463
      %1576 = vst.msk [vmem:[%s172 + $0x148] sm:$0xff] %vm1534, %v1466
      %1577 = vst.msk [vmem:[%s172 + $0x150] sm:$0xff] %vm1534, %v1469
      %1578 = vst.msk [vmem:[%s172 + $0x158] sm:$0xff] %vm1534, %v1472
      %1579 = vst.msk [vmem:[%s172 + $0x160] sm:$0xff] %vm1534, %v1475
      %1580 = vst.msk [vmem:[%s172 + $0x168] sm:$0xff] %vm1534, %v1478
      %1581 = vst.msk [vmem:[%s172 + $0x170] sm:$0xff] %vm1534, %v1481
      %1582 = vst.msk [vmem:[%s172 + $0x178] sm:$0xff] %vm1534, %v1484
      %1583 = vst.msk [vmem:[%s172 + $0x180] sm:$0xff] %vm1534, %v1487
      %1584 = vst.msk [vmem:[%s172 + $0x188] sm:$0xff] %vm1534, %v1490
      %1585 = vst.msk [vmem:[%s172 + $0x190] sm:$0xff] %vm1534, %v1493
      %1586 = vst.msk [vmem:[%s172 + $0x198] sm:$0xff] %vm1534, %v1496
      %1587 = vst.msk [vmem:[%s172 + $0x1a0] sm:$0xff] %vm1534, %v1499
      %1588 = vst.msk [vmem:[%s172 + $0x1a8] sm:$0xff] %vm1534, %v1502
      %1589 = vst.msk [vmem:[%s172 + $0x1b0] sm:$0xff] %vm1534, %v1505
      %1590 = vst.msk [vmem:[%s172 + $0x1b8] sm:$0xff] %vm1534, %v1508
      %1591 = vst.msk [vmem:[%s172 + $0x1c0] sm:$0xff] %vm1534, %v1511
      %1592 = vst.msk [vmem:[%s172 + $0x1c8] sm:$0xff] %vm1534, %v1514
      %1593 = vst.msk [vmem:[%s172 + $0x1d0] sm:$0xff] %vm1534, %v1517
      %1594 = vst.msk [vmem:[%s172 + $0x1d8] sm:$0xff] %vm1534, %v1520
      %1595 = vst.msk [vmem:[%s172 + $0x1e0] sm:$0xff] %vm1534, %v1523
      %1596 = vst.msk [vmem:[%s172 + $0x1e8] sm:$0xff] %vm1534, %v1526
      %1597 = vst.msk [vmem:[%s172 + $0x1f0] sm:$0xff] %vm1534, %v1529
      %1598 = vst.msk [vmem:[%s172 + $0x1f8] sm:$0xff] %vm1534, %v1532
      %s1599 = smul.u32 64, %s14
      %p1600 = scmp.lt.s32.totalorder %s1599, 127
      %s1601 = scalar_select %p1600, %s1599, 127
      %s1602 = smul.addr %s1601, 8
      %s1603 = scalar_lea.vmem %s3, %s1602
      // Predicated region
      $region33: #{discriminator_forward.1} parent=31 // pred_check
        %p1604 = pneg %p100
      $region34: #{discriminator_forward.1} parent=31 // pred_check_branch
        %1606 = sbr.rel (%p1604) target = $region36
      $region35: #{discriminator_forward.1} parent=31 // pred_region
        %s1607 = smul.u32 64, %s14
      $region36: #{discriminator_forward.1} parent=31 // pred_fallthru
        _
    $region32: #{discriminator_forward.1} parent=5 // pred_fallthru
      _
    %p1608 = scmp.le.s32.totalorder 2, %s9
    // Predicated region
    $region37: #{discriminator_forward.1} parent=5 // pred_check
      %p1609 = pneg %p1608
    $region38: #{discriminator_forward.1} parent=5 // pred_check_branch
      %1611 = sbr.rel (%p1609) target = $region40
    $region39: #{discriminator_forward.1} parent=5 // pred_region
      %s1612 = ssub.s32 %s9, 2
      // Predicated region
      $region41: #{discriminator_forward.1} parent=39 // pred_check
        %p1613 = pneg %p106
      $region42: #{discriminator_forward.1} parent=39 // pred_check_branch
        %1615 = sbr.rel (%p1613) target = $region44
      $region43: #{discriminator_forward.1} parent=39 // pred_region
        %s1616 = smul.u32 64, %s15
        %p1617 = scmp.lt.s32.totalorder %s1616, 127
        %s1618 = scalar_select %p1617, %s1616, 127
        %s1619 = smul.addr %s1618, 8
        %s1620 = scalar_lea.vmem %s3, %s1619
      $region44: #{discriminator_forward.1} parent=39 // pred_fallthru
        _
    $region40: #{discriminator_forward.1} parent=5 // pred_fallthru
      _
  $region6: #{discriminator_forward.1} parent=0 // loop_footer
    %s13 = sadd.s32 1, %s9
  $region7: #{discriminator_forward.1} parent=0 // loop_footer_branch
    %8 = sbr.rel target = $region3
  $region8: #{discriminator_forward.1} parent=0 // loop_exit
    _

</llo_original>
